<compile_context>
chip_gen: v7x
topology: tpu7x:2x2x1
jax: 0.10.0
libtpu: 0.0.40
codegen_flags: <defaults>
</compile_context>

<pallas_src>
import functools

import jax
import jax.numpy as jnp
from jax.experimental import pallas as pl
from jax.experimental.pallas import tpu as pltpu


def _round_up(x, m):
    return (x + m - 1) // m * m


def _fused_double_mlp_kernel(*refs, n_layers, relu_flags):
    # refs = (x_ref, w0, b0, w1, b1, ..., w_{L-1}, b_{L-1}, o_ref)
    # x_ref : (Bp, Kp0)          shared input (same obs/act for both critics)
    # w_l   : (1, Kp_l, Np_l)    this critic's layer-l weight (selected by grid idx)
    # b_l   : (1, 1, Np_l)
    # o_ref : (1, Bp, Np_out)
    x_ref = refs[0]
    o_ref = refs[1 + 2 * n_layers]

    cur = x_ref[...]  # (Bp, Kp0) f32 -- activations stay on-chip for all layers
    for l in range(n_layers):
        w = refs[1 + 2 * l][0]   # (Kp_l, Np_l)
        b = refs[2 + 2 * l][0]   # (1,  Np_l)
        y = jnp.dot(cur, w, preferred_element_type=jnp.float32) + b
        if relu_flags[l]:
            y = jnp.maximum(y, 0.0)
        cur = y
    o_ref[0] = cur.astype(o_ref.dtype)


class PallasDoubleCritic:
    """JAX/Pallas port of DoubleCritic: (obs, act) -> [Q1(s,a), Q2(s,a)].

    Each critic = preprocess MLP (Linear+ReLU blocks) followed by the `last` MLP
    (Linear+ReLU hidden blocks, final Linear -> 1). last2 starts as a deepcopy of
    last1 (same initial params), matching the PyTorch module; the two preprocess
    nets are independently initialized. No norm layers (reference default).
    """

    def __init__(self, obs_dim, act_dim, preprocess_hidden=(32, 32),
                 last_hidden=(32,), key=None):
        if key is None:
            key = jax.random.PRNGKey(0)
        self.in_dim = obs_dim + act_dim
        dims = [self.in_dim, *list(preprocess_hidden), *list(last_hidden), 1]
        self.dims = dims
        self.n_layers = len(dims) - 1
        # ReLU after every hidden Linear, no activation on the final Q head.
        self.relu_flags = tuple([True] * (self.n_layers - 1) + [False])

        n_pre = len(preprocess_hidden)
        k1, k2 = jax.random.split(key)
        keys1 = jax.random.split(k1, self.n_layers)
        keys2 = jax.random.split(k2, max(n_pre, 1))

        def init_linear(k, fan_in, fan_out):
            # PyTorch nn.Linear default init: U(-1/sqrt(fan_in), 1/sqrt(fan_in))
            kw, kb = jax.random.split(k)
            bound = 1.0 / (fan_in ** 0.5)
            w = jax.random.uniform(kw, (fan_in, fan_out), jnp.float32, -bound, bound)
            b = jax.random.uniform(kb, (fan_out,), jnp.float32, -bound, bound)
            return w, b

        layers1 = [init_linear(keys1[l], dims[l], dims[l + 1])
                   for l in range(self.n_layers)]
        layers2 = []
        for l in range(self.n_layers):
            if l < n_pre:
                layers2.append(init_linear(keys2[l], dims[l], dims[l + 1]))
            else:
                layers2.append(layers1[l])  # last2 = deepcopy(last1)
        self.raw_layers = (tuple(layers1), tuple(layers2))

        # Pre-pad once at construction: per layer, weights stacked (2, Kp, Np),
        # biases (2, 1, Np). Zero padding is invariant and costs nothing per forward.
        self.Kp = [_round_up(dims[l], 128) for l in range(self.n_layers)]
        self.Np = [_round_up(dims[l + 1], 128) for l in range(self.n_layers)]
        wp, bp = [], []
        for l in range(self.n_layers):
            w_s = jnp.zeros((2, self.Kp[l], self.Np[l]), jnp.float32)
            b_s = jnp.zeros((2, 1, self.Np[l]), jnp.float32)
            for c, layers in enumerate(self.raw_layers):
                w, b = layers[l]
                w_s = w_s.at[c, :dims[l], :dims[l + 1]].set(w)
                b_s = b_s.at[c, 0, :dims[l + 1]].set(b)
            wp.append(w_s)
            bp.append(b_s)
        self.wp = tuple(wp)
        self.bp = tuple(bp)

        # One jitted forward: flatten/concat + pad + fused kernel + final slice.
        self._forward_jit = jax.jit(self._forward_impl)
        # TODO(synk): for realistic critic widths (>=512), store weights in bf16
        # with f32 accumulation and tile the batch axis with a parallel grid dim.

    # --------------------------------------------------------------------- #
    def _fused_pallas_call(self, xp, wp, bp, Bp):
        L = self.n_layers
        in_specs = [pl.BlockSpec((Bp, self.Kp[0]), lambda c: (0, 0))]
        operands = [xp]
        for l in range(L):
            in_specs.append(pl.BlockSpec((1, self.Kp[l], self.Np[l]),
                                         lambda c: (c, 0, 0)))
            in_specs.append(pl.BlockSpec((1, 1, self.Np[l]),
                                         lambda c: (c, 0, 0)))
            operands.append(wp[l])
            operands.append(bp[l])
        Np_out = self.Np[-1]

        flops = 2 * sum(2 * Bp * self.Kp[l] * self.Np[l] for l in range(L))
        bytes_accessed = 4 * (int(xp.size)
                              + sum(int(w.size) for w in wp)
                              + sum(int(b.size) for b in bp)
                              + 2 * Bp * Np_out)

        kernel = functools.partial(_fused_double_mlp_kernel,
                                   n_layers=L, relu_flags=self.relu_flags)

        return pl.pallas_call(
            kernel,
            out_shape=jax.ShapeDtypeStruct((2, Bp, Np_out), jnp.float32),
            grid_spec=pltpu.PrefetchScalarGridSpec(
                num_scalar_prefetch=0,
                grid=(2,),  # one grid step per critic
                in_specs=in_specs,
                out_specs=pl.BlockSpec((1, Bp, Np_out), lambda c: (c, 0, 0)),
            ),
            compiler_params=pltpu.CompilerParams(
                dimension_semantics=("parallel",),  # shard critics across TCs on v7x
                vmem_limit_bytes=32 * 1024 * 1024,
            ),
            cost_estimate=pl.CostEstimate(
                flops=flops, transcendentals=0, bytes_accessed=bytes_accessed),
        )(*operands)

    def _forward_impl(self, x, wp, bp):
        # x: (B, in_dim) f32 (already flattened + concatenated)
        B, K = x.shape
        Bp = _round_up(max(B, 1), 8)
        # Pad input once for the whole fused forward (zero pad => exact result).
        xp = jnp.zeros((Bp, self.Kp[0]), jnp.float32).at[:B, :K].set(x)
        out = self._fused_pallas_call(xp, wp, bp, Bp)  # (2, Bp, Np_out)
        # Single slice at the very end.
        return out[0, :B, :1], out[1, :B, :1]

    # --------------------------------------------------------------------- #
    def __call__(self, obs, act=None):
        obs = jnp.asarray(obs, jnp.float32).reshape(obs.shape[0], -1)  # flatten(1)
        if act is not None:
            act = jnp.asarray(act, jnp.float32).reshape(act.shape[0], -1)
            x = jnp.concatenate([obs, act], axis=1)
        else:
            x = obs
        assert x.shape[1] == self.in_dim, (x.shape[1], self.in_dim)
        q1, q2 = self._forward_jit(x, self.wp, self.bp)
        return [q1, q2]

    def predict(self, obs, act=None):
        q1, q2 = self(obs, act)
        return jnp.minimum(q1, q2), [q1, q2]


def reference_double_critic(obs, act, raw_layers):
    x = jnp.asarray(obs, jnp.float32).reshape(obs.shape[0], -1)
    if act is not None:
        a = jnp.asarray(act, jnp.float32).reshape(act.shape[0], -1)
        x = jnp.concatenate([x, a], axis=1)
    outs = []
    for layers in raw_layers:
        h = x
        for i, (w, b) in enumerate(layers):
            h = h @ w + b
            if i < len(layers) - 1:
                h = jnp.maximum(h, 0.0)
        outs.append(h)
    return outs


if __name__ == "__main__":
    key = jax.random.PRNGKey(0)
    k_obs, k_act, k_params = jax.random.split(key, 3)

    # obs (2, 4, 16, 16) flattens to (2, 1024); act (2, 8) -> concat (2, 1032)
    obs = jax.random.normal(k_obs, (2, 4, 16, 16), dtype=jnp.float32)
    act = jax.random.normal(k_act, (2, 8), dtype=jnp.float32)

    critic = PallasDoubleCritic(obs_dim=4 * 16 * 16, act_dim=8,
                                preprocess_hidden=(32, 32), last_hidden=(32,),
                                key=k_params)

    q_min, (q1, q2) = critic.predict(obs, act)
    q_min = jax.block_until_ready(q_min)

    r1, r2 = reference_double_critic(obs, act, critic.raw_layers)
    assert q1.shape == (2, 1) and q2.shape == (2, 1), (q1.shape, q2.shape)
    assert jnp.allclose(q1, r1, atol=1e-4, rtol=1e-4), "critic 1 mismatch vs reference"
    assert jnp.allclose(q2, r2, atol=1e-4, rtol=1e-4), "critic 2 mismatch vs reference"
    assert jnp.allclose(q_min, jnp.minimum(r1, r2), atol=1e-4, rtol=1e-4)

    print("KERNEL_OK")
</pallas_src>

<mosaic_0001>
module attributes {stable_mosaic.version = 11 : i64} {
  func.func @_fused_double_mlp_kernel(%arg0: i32, %arg1: memref<8x1152xf32, #tpu.memory_space<vmem>>, %arg2: memref<1x1152x128xf32, #tpu.memory_space<vmem>>, %arg3: memref<1x1x128xf32, #tpu.memory_space<vmem>>, %arg4: memref<1x128x128xf32, #tpu.memory_space<vmem>>, %arg5: memref<1x1x128xf32, #tpu.memory_space<vmem>>, %arg6: memref<1x128x128xf32, #tpu.memory_space<vmem>>, %arg7: memref<1x1x128xf32, #tpu.memory_space<vmem>>, %arg8: memref<1x128x128xf32, #tpu.memory_space<vmem>>, %arg9: memref<1x1x128xf32, #tpu.memory_space<vmem>>, %arg10: memref<1x8x128xf32, #tpu.memory_space<vmem>>) attributes {dimension_semantics = [#tpu.dimension_semantics<parallel>], iteration_bounds = array<i64: 2>, scalar_prefetch = 0 : i64, scratch_operands = 0 : i64, tpu.core_type = #tpu.core_type<tc>, window_params = [{pipeline_mode = #tpu.pipeline_mode<synchronous>, transform_indices = @transform_0, window_bounds = array<i64: 8, 1152>}, {transform_indices = @transform_1, window_bounds = array<i64: 1, 1152, 128>}, {transform_indices = @transform_2, window_bounds = array<i64: 1, 1, 128>}, {transform_indices = @transform_3, window_bounds = array<i64: 1, 128, 128>}, {transform_indices = @transform_4, window_bounds = array<i64: 1, 1, 128>}, {transform_indices = @transform_5, window_bounds = array<i64: 1, 128, 128>}, {transform_indices = @transform_6, window_bounds = array<i64: 1, 1, 128>}, {transform_indices = @transform_7, window_bounds = array<i64: 1, 128, 128>}, {transform_indices = @transform_8, window_bounds = array<i64: 1, 1, 128>}, {transform_indices = @transform_9, window_bounds = array<i64: 1, 8, 128>}]} {
    %c0 = arith.constant 0 : index
    %c0_0 = arith.constant 0 : index
    %0 = vector.load %arg1[%c0, %c0_0] : memref<8x1152xf32, #tpu.memory_space<vmem>>, vector<8x1152xf32>
    %c0_1 = arith.constant 0 : index
    %c0_2 = arith.constant 0 : index
    %c0_3 = arith.constant 0 : index
    %1 = vector.load %arg2[%c0_1, %c0_2, %c0_3] : memref<1x1152x128xf32, #tpu.memory_space<vmem>>, vector<1x1152x128xf32>
    %2 = vector.shape_cast %1 : vector<1x1152x128xf32> to vector<1152x128xf32>
    %c0_4 = arith.constant 0 : index
    %c0_5 = arith.constant 0 : index
    %c0_6 = arith.constant 0 : index
    %3 = vector.load %arg3[%c0_4, %c0_5, %c0_6] : memref<1x1x128xf32, #tpu.memory_space<vmem>>, vector<1x1x128xf32>
    %4 = vector.shape_cast %3 : vector<1x1x128xf32> to vector<1x128xf32>
    %cst = arith.constant dense<0.000000e+00> : vector<8x128xf32>
    %5 = tpu.matmul %0, %2, %cst {dimension_numbers = #tpu.dot_dimension_numbers<[1], [0], [0], [1], [0, 0, 1, 1], [], []>} : vector<8x1152xf32>, vector<1152x128xf32>, vector<8x128xf32> -> vector<8x128xf32>
    %6 = vector.broadcast %4 : vector<1x128xf32> to vector<8x128xf32>
    %7 = arith.addf %5, %6 : vector<8x128xf32>
    %cst_7 = arith.constant 0.000000e+00 : f32
    %8 = vector.broadcast %cst_7 : f32 to vector<8x128xf32>
    %9 = arith.maximumf %7, %8 : vector<8x128xf32>
    %c0_8 = arith.constant 0 : index
    %c0_9 = arith.constant 0 : index
    %c0_10 = arith.constant 0 : index
    %10 = vector.load %arg4[%c0_8, %c0_9, %c0_10] : memref<1x128x128xf32, #tpu.memory_space<vmem>>, vector<1x128x128xf32>
    %11 = vector.shape_cast %10 : vector<1x128x128xf32> to vector<128x128xf32>
    %c0_11 = arith.constant 0 : index
    %c0_12 = arith.constant 0 : index
    %c0_13 = arith.constant 0 : index
    %12 = vector.load %arg5[%c0_11, %c0_12, %c0_13] : memref<1x1x128xf32, #tpu.memory_space<vmem>>, vector<1x1x128xf32>
    %13 = vector.shape_cast %12 : vector<1x1x128xf32> to vector<1x128xf32>
    %cst_14 = arith.constant dense<0.000000e+00> : vector<8x128xf32>
    %14 = tpu.matmul %9, %11, %cst_14 {dimension_numbers = #tpu.dot_dimension_numbers<[1], [0], [0], [1], [0, 0, 1, 1], [], []>} : vector<8x128xf32>, vector<128x128xf32>, vector<8x128xf32> -> vector<8x128xf32>
    %15 = vector.broadcast %13 : vector<1x128xf32> to vector<8x128xf32>
    %16 = arith.addf %14, %15 : vector<8x128xf32>
    %cst_15 = arith.constant 0.000000e+00 : f32
    %17 = vector.broadcast %cst_15 : f32 to vector<8x128xf32>
    %18 = arith.maximumf %16, %17 : vector<8x128xf32>
    %c0_16 = arith.constant 0 : index
    %c0_17 = arith.constant 0 : index
    %c0_18 = arith.constant 0 : index
    %19 = vector.load %arg6[%c0_16, %c0_17, %c0_18] : memref<1x128x128xf32, #tpu.memory_space<vmem>>, vector<1x128x128xf32>
    %20 = vector.shape_cast %19 : vector<1x128x128xf32> to vector<128x128xf32>
    %c0_19 = arith.constant 0 : index
    %c0_20 = arith.constant 0 : index
    %c0_21 = arith.constant 0 : index
    %21 = vector.load %arg7[%c0_19, %c0_20, %c0_21] : memref<1x1x128xf32, #tpu.memory_space<vmem>>, vector<1x1x128xf32>
    %22 = vector.shape_cast %21 : vector<1x1x128xf32> to vector<1x128xf32>
    %cst_22 = arith.constant dense<0.000000e+00> : vector<8x128xf32>
    %23 = tpu.matmul %18, %20, %cst_22 {dimension_numbers = #tpu.dot_dimension_numbers<[1], [0], [0], [1], [0, 0, 1, 1], [], []>} : vector<8x128xf32>, vector<128x128xf32>, vector<8x128xf32> -> vector<8x128xf32>
    %24 = vector.broadcast %22 : vector<1x128xf32> to vector<8x128xf32>
    %25 = arith.addf %23, %24 : vector<8x128xf32>
    %cst_23 = arith.constant 0.000000e+00 : f32
    %26 = vector.broadcast %cst_23 : f32 to vector<8x128xf32>
    %27 = arith.maximumf %25, %26 : vector<8x128xf32>
    %c0_24 = arith.constant 0 : index
    %c0_25 = arith.constant 0 : index
    %c0_26 = arith.constant 0 : index
    %28 = vector.load %arg8[%c0_24, %c0_25, %c0_26] : memref<1x128x128xf32, #tpu.memory_space<vmem>>, vector<1x128x128xf32>
    %29 = vector.shape_cast %28 : vector<1x128x128xf32> to vector<128x128xf32>
    %c0_27 = arith.constant 0 : index
    %c0_28 = arith.constant 0 : index
    %c0_29 = arith.constant 0 : index
    %30 = vector.load %arg9[%c0_27, %c0_28, %c0_29] : memref<1x1x128xf32, #tpu.memory_space<vmem>>, vector<1x1x128xf32>
    %31 = vector.shape_cast %30 : vector<1x1x128xf32> to vector<1x128xf32>
    %cst_30 = arith.constant dense<0.000000e+00> : vector<8x128xf32>
    %32 = tpu.matmul %27, %29, %cst_30 {dimension_numbers = #tpu.dot_dimension_numbers<[1], [0], [0], [1], [0, 0, 1, 1], [], []>} : vector<8x128xf32>, vector<128x128xf32>, vector<8x128xf32> -> vector<8x128xf32>
    %33 = vector.broadcast %31 : vector<1x128xf32> to vector<8x128xf32>
    %34 = arith.addf %32, %33 : vector<8x128xf32>
    %c0_31 = arith.constant 0 : index
    %c0_32 = arith.constant 0 : index
    %c0_33 = arith.constant 0 : index
    %35 = vector.load %arg10[%c0_31, %c0_32, %c0_33] : memref<1x8x128xf32, #tpu.memory_space<vmem>>, vector<1x8x128xf32>
    %36 = vector.shape_cast %35 : vector<1x8x128xf32> to vector<8x128xf32>
    %37 = vector.shape_cast %34 : vector<8x128xf32> to vector<1x8x128xf32>
    tpu.vector_store %arg10[%c0_31, %c0_32, %c0_33], %37 {strides = array<i32>} : memref<1x8x128xf32, #tpu.memory_space<vmem>>, vector<1x8x128xf32>,
    return
  }
  func.func @transform_0(%arg0: i32) -> (i32, i32) {
    %c0_i32 = arith.constant 0 : i32
    %c0_i32_0 = arith.constant 0 : i32
    %c0_i32_1 = arith.constant 0 : i32
    return %c0_i32, %c0_i32_0 : i32, i32
  }
  func.func @transform_1(%arg0: i32) -> (i32, i32, i32) {
    %c0_i32 = arith.constant 0 : i32
    %c0_i32_0 = arith.constant 0 : i32
    %c0_i32_1 = arith.constant 0 : i32
    return %arg0, %c0_i32, %c0_i32_0 : i32, i32, i32
  }
  func.func @transform_2(%arg0: i32) -> (i32, i32, i32) {
    %c0_i32 = arith.constant 0 : i32
    %c0_i32_0 = arith.constant 0 : i32
    %c0_i32_1 = arith.constant 0 : i32
    return %arg0, %c0_i32, %c0_i32_0 : i32, i32, i32
  }
  func.func @transform_3(%arg0: i32) -> (i32, i32, i32) {
    %c0_i32 = arith.constant 0 : i32
    %c0_i32_0 = arith.constant 0 : i32
    %c0_i32_1 = arith.constant 0 : i32
    return %arg0, %c0_i32, %c0_i32_0 : i32, i32, i32
  }
  func.func @transform_4(%arg0: i32) -> (i32, i32, i32) {
    %c0_i32 = arith.constant 0 : i32
    %c0_i32_0 = arith.constant 0 : i32
    %c0_i32_1 = arith.constant 0 : i32
    return %arg0, %c0_i32, %c0_i32_0 : i32, i32, i32
  }
  func.func @transform_5(%arg0: i32) -> (i32, i32, i32) {
    %c0_i32 = arith.constant 0 : i32
    %c0_i32_0 = arith.constant 0 : i32
    %c0_i32_1 = arith.constant 0 : i32
    return %arg0, %c0_i32, %c0_i32_0 : i32, i32, i32
  }
  func.func @transform_6(%arg0: i32) -> (i32, i32, i32) {
    %c0_i32 = arith.constant 0 : i32
    %c0_i32_0 = arith.constant 0 : i32
    %c0_i32_1 = arith.constant 0 : i32
    return %arg0, %c0_i32, %c0_i32_0 : i32, i32, i32
  }
  func.func @transform_7(%arg0: i32) -> (i32, i32, i32) {
    %c0_i32 = arith.constant 0 : i32
    %c0_i32_0 = arith.constant 0 : i32
    %c0_i32_1 = arith.constant 0 : i32
    return %arg0, %c0_i32, %c0_i32_0 : i32, i32, i32
  }
  func.func @transform_8(%arg0: i32) -> (i32, i32, i32) {
    %c0_i32 = arith.constant 0 : i32
    %c0_i32_0 = arith.constant 0 : i32
    %c0_i32_1 = arith.constant 0 : i32
    return %arg0, %c0_i32, %c0_i32_0 : i32, i32, i32
  }
  func.func @transform_9(%arg0: i32) -> (i32, i32, i32) {
    %c0_i32 = arith.constant 0 : i32
    %c0_i32_0 = arith.constant 0 : i32
    %c0_i32_1 = arith.constant 0 : i32
    return %arg0, %c0_i32, %c0_i32_0 : i32, i32, i32
  }
}

</mosaic_0001>

<llo_original>
// kernel: _forward_impl.1
$region0: #{_forward_impl.1}
  #allocation0 [shape = 'u32[]', space=smem, size = 0x4, offset = 0x4, fixed_abs, tag = 'smem constant byte address 0x4 - core index']
  #allocation1 [shape = 'u32[144,128]{1,0:T(1,128)}', space=vmem, size = 0x12000, scoped, tag = 'internal scratch']
  %s0 = inlined_call_operand.vmem [shape: f32[8,1152], index: 0, kind: input, shape index: {}]
  %s1 = inlined_call_operand.hbm [shape: f32[2,1152,128], index: 1, kind: input, shape index: {}]
  %s2 = inlined_call_operand.hbm [shape: f32[2,1,128], index: 2, kind: input, shape index: {}]
  %s3 = inlined_call_operand.hbm [shape: f32[2,128,128], index: 3, kind: input, shape index: {}]
  %s4 = inlined_call_operand.hbm [shape: f32[2,1,128], index: 4, kind: input, shape index: {}]
  %s5 = inlined_call_operand.hbm [shape: f32[2,128,128], index: 5, kind: input, shape index: {}]
  %s6 = inlined_call_operand.hbm [shape: f32[2,1,128], index: 6, kind: input, shape index: {}]
  %s7 = inlined_call_operand.hbm [shape: f32[2,128,128], index: 7, kind: input, shape index: {}]
  %s8 = inlined_call_operand.hbm [shape: f32[2,1,128], index: 8, kind: input, shape index: {}]
  %s9 = inlined_call_operand.vmem [shape: f32[2,8,128], index: 9, kind: output, shape index: {}]
  %s10 = sld [smem:[#allocation0]]
  $region101: #{_forward_impl.1} parent=0
    _
  %s12 = ssub.s32 1, %s10
  %s13 = scalar_select 0, %s12, %s10
  $region1: #{_forward_impl.1} parent=0
    #allocation2 [shape = 'u8[1179648]{0}', space=vmem, size = 0x120000, scoped, tag = 'input window, operand 1']
    #allocation3 [shape = 's32[2]{0}', space=sflag, size = 0x8, scoped, tag = 'scoped memory for _forward_impl.1']
    #allocation4 [shape = 'u8[1024]{0}', space=vmem, size = 0x400, scoped, tag = 'input window, operand 2']
    #allocation5 [shape = 's32[2]{0}', space=sflag, size = 0x8, scoped, tag = 'scoped memory for _forward_impl.1']
    #allocation6 [shape = 'u8[131072]{0}', space=vmem, size = 0x20000, scoped, tag = 'input window, operand 3']
    #allocation7 [shape = 'u8[1024]{0}', space=vmem, size = 0x400, scoped, tag = 'input window, operand 4']
    #allocation8 [shape = 's32[2]{0}', space=sflag, size = 0x8, scoped, tag = 'scoped memory for _forward_impl.1']
    #allocation9 [shape = 'u8[131072]{0}', space=vmem, size = 0x20000, scoped, tag = 'input window, operand 5']
    #allocation10 [shape = 'u8[1024]{0}', space=vmem, size = 0x400, scoped, tag = 'input window, operand 6']
    #allocation11 [shape = 's32[2]{0}', space=sflag, size = 0x8, scoped, tag = 'scoped memory for _forward_impl.1']
    #allocation12 [shape = 'u8[131072]{0}', space=vmem, size = 0x20000, scoped, tag = 'input window, operand 7']
    #allocation13 [shape = 'u8[1024]{0}', space=vmem, size = 0x400, scoped, tag = 'input window, operand 8']
    #allocation14 [shape = 's32[2]{0}', space=sflag, size = 0x8, scoped, tag = 'scoped memory for _forward_impl.1']
    %14 = vsyncpa [#allocation3], 0
    %s15 = scalar_lea.sflag [#allocation3], 1
    %16 = vsyncpa %s15, 0
    %17 = vsyncpa [#allocation5], 0
    %s18 = scalar_lea.sflag [#allocation5], 1
    %19 = vsyncpa %s18, 0
    %20 = vsyncpa [#allocation8], 0
    %s21 = scalar_lea.sflag [#allocation8], 1
    %22 = vsyncpa %s21, 0
    %23 = vsyncpa [#allocation11], 0
    %s24 = scalar_lea.sflag [#allocation11], 1
    %25 = vsyncpa %s24, 0
    %26 = vsyncpa [#allocation14], 0
    %s27 = scalar_lea.sflag [#allocation14], 1
    %28 = vsyncpa %s27, 0
    loop: start=0, step=1, limit=4
    $region2: #{_forward_impl.1} parent=1 // loop_pre_header
      _
    $region3: #{_forward_impl.1} parent=1 // loop_header
      %s30 = sphi 0, %s34
      %p31 = scmp.ge.s32.totalorder %s30, 4
      %s38 = sphi 0, %s38
      %s40 = sphi 0, %s38
      %s41 = sphi 0, %s40
      %s55 = sphi 0, %s41
      %s61 = sphi 0, %s63
      %s64 = sphi 0, %s61
      %s65 = sphi 0, %s64
      %s81 = sphi 0, %s65
      %s87 = sphi 0, %s89
      %s90 = sphi 0, %s87
      %s91 = sphi 0, %s90
      %s107 = sphi 0, %s91
      %s113 = sphi 0, %s115
      %s116 = sphi 0, %s113
      %s117 = sphi 0, %s116
      %s133 = sphi 0, %s117
      %s139 = sphi 0, %s141
      %s142 = sphi 0, %s139
      %s143 = sphi 0, %s142
      %s159 = sphi 0, %s143
      %s165 = sphi 0, %s167
      %s168 = sphi 0, %s165
      %s169 = sphi 0, %s168
      %s185 = sphi 0, %s169
      %s191 = sphi 0, %s193
      %s194 = sphi 0, %s191
      %s195 = sphi 0, %s194
      %s211 = sphi 0, %s195
      %s217 = sphi 0, %s219
      %s220 = sphi 0, %s217
      %s221 = sphi 0, %s220
      %s237 = sphi 0, %s221
      %s243 = sphi 0, %s245
      %s246 = sphi 0, %s243
      %s247 = sphi 0, %s246
      %s263 = sphi 0, %s247
      %s269 = sphi 0, %s271
      %s272 = sphi 0, %s269
      %s273 = sphi 0, %s272
      %s289 = sphi 0, %s273
    $region4: #{_forward_impl.1} parent=1 // loop_header_branch
      %33 = sbr.rel (%p31) target = $region8
    $region5: #{_forward_impl.1} parent=1 // loop_body
      %s35 = ssub.s32 %s30, 1
      %s36 = ssub.s32 %s30, 2
      %s37 = sadd.s32 %s30, 1
      %s39 = sadd.s32 %s38, 1
      %p42 = scmp.eq.s32.totalorder %s30, 1
      %p43 = scmp.ne.s32.totalorder %s38, %s40
      %p44 = scmp.eq.s32.totalorder %s30, 0
      %p45 = por %p43, %p44
      %p46 = scmp.ne.s32.totalorder %s38, %s40
      %p47 = scmp.eq.s32.totalorder %s35, 1
      %p48 = por %p46, %p47
      %p49 = scmp.ne.s32.totalorder %s40, %s41
      %p50 = scmp.eq.s32.totalorder %s35, 0
      %p51 = por %p49, %p50
      %p52 = scmp.ne.s32.totalorder %s40, %s41
      %p53 = scmp.eq.s32.totalorder %s36, 1
      %p54 = por %p52, %p53
      %p56 = scmp.ne.s32.totalorder %s41, %s55
      %p57 = scmp.eq.s32.totalorder %s36, 0
      %p58 = por %p56, %p57
      %s59 = ssub.s32 %s30, %s37
      %p60 = scmp.eq.s32.totalorder %s59, 0
      %s62 = sadd.s32 %s61, 1
      %s63 = scalar_select %p60, %s61, %s62
      %p66 = pneg %p60
      %p67 = scmp.eq.s32.totalorder %s30, 1
      %p68 = por %p66, %p67
      %p69 = scmp.ne.s32.totalorder %s61, %s64
      %p70 = scmp.eq.s32.totalorder %s30, 0
      %p71 = por %p69, %p70
      %p72 = scmp.ne.s32.totalorder %s61, %s64
      %p73 = scmp.eq.s32.totalorder %s35, 1
      %p74 = por %p72, %p73
      %p75 = scmp.ne.s32.totalorder %s64, %s65
      %p76 = scmp.eq.s32.totalorder %s35, 0
      %p77 = por %p75, %p76
      %p78 = scmp.ne.s32.totalorder %s64, %s65
      %p79 = scmp.eq.s32.totalorder %s36, 1
      %p80 = por %p78, %p79
      %p82 = scmp.ne.s32.totalorder %s65, %s81
      %p83 = scmp.eq.s32.totalorder %s36, 0
      %p84 = por %p82, %p83
      %s85 = ssub.s32 %s30, %s37
      %p86 = scmp.eq.s32.totalorder %s85, 0
      %s88 = sadd.s32 %s87, 1
      %s89 = scalar_select %p86, %s87, %s88
      %p92 = pneg %p86
      %p93 = scmp.eq.s32.totalorder %s30, 1
      %p94 = por %p92, %p93
      %p95 = scmp.ne.s32.totalorder %s87, %s90
      %p96 = scmp.eq.s32.totalorder %s30, 0
      %p97 = por %p95, %p96
      %p98 = scmp.ne.s32.totalorder %s87, %s90
      %p99 = scmp.eq.s32.totalorder %s35, 1
      %p100 = por %p98, %p99
      %p101 = scmp.ne.s32.totalorder %s90, %s91
      %p102 = scmp.eq.s32.totalorder %s35, 0
      %p103 = por %p101, %p102
      %p104 = scmp.ne.s32.totalorder %s90, %s91
      %p105 = scmp.eq.s32.totalorder %s36, 1
      %p106 = por %p104, %p105
      %p108 = scmp.ne.s32.totalorder %s91, %s107
      %p109 = scmp.eq.s32.totalorder %s36, 0
      %p110 = por %p108, %p109
      %s111 = ssub.s32 %s30, %s37
      %p112 = scmp.eq.s32.totalorder %s111, 0
      %s114 = sadd.s32 %s113, 1
      %s115 = scalar_select %p112, %s113, %s114
      %p118 = pneg %p112
      %p119 = scmp.eq.s32.totalorder %s30, 1
      %p120 = por %p118, %p119
      %p121 = scmp.ne.s32.totalorder %s113, %s116
      %p122 = scmp.eq.s32.totalorder %s30, 0
      %p123 = por %p121, %p122
      %p124 = scmp.ne.s32.totalorder %s113, %s116
      %p125 = scmp.eq.s32.totalorder %s35, 1
      %p126 = por %p124, %p125
      %p127 = scmp.ne.s32.totalorder %s116, %s117
      %p128 = scmp.eq.s32.totalorder %s35, 0
      %p129 = por %p127, %p128
      %p130 = scmp.ne.s32.totalorder %s116, %s117
      %p131 = scmp.eq.s32.totalorder %s36, 1
      %p132 = por %p130, %p131
      %p134 = scmp.ne.s32.totalorder %s117, %s133
      %p135 = scmp.eq.s32.totalorder %s36, 0
      %p136 = por %p134, %p135
      %s137 = ssub.s32 %s30, %s37
      %p138 = scmp.eq.s32.totalorder %s137, 0
      %s140 = sadd.s32 %s139, 1
      %s141 = scalar_select %p138, %s139, %s140
      %p144 = pneg %p138
      %p145 = scmp.eq.s32.totalorder %s30, 1
      %p146 = por %p144, %p145
      %p147 = scmp.ne.s32.totalorder %s139, %s142
      %p148 = scmp.eq.s32.totalorder %s30, 0
      %p149 = por %p147, %p148
      %p150 = scmp.ne.s32.totalorder %s139, %s142
      %p151 = scmp.eq.s32.totalorder %s35, 1
      %p152 = por %p150, %p151
      %p153 = scmp.ne.s32.totalorder %s142, %s143
      %p154 = scmp.eq.s32.totalorder %s35, 0
      %p155 = por %p153, %p154
      %p156 = scmp.ne.s32.totalorder %s142, %s143
      %p157 = scmp.eq.s32.totalorder %s36, 1
      %p158 = por %p156, %p157
      %p160 = scmp.ne.s32.totalorder %s143, %s159
      %p161 = scmp.eq.s32.totalorder %s36, 0
      %p162 = por %p160, %p161
      %s163 = ssub.s32 %s30, %s37
      %p164 = scmp.eq.s32.totalorder %s163, 0
      %s166 = sadd.s32 %s165, 1
      %s167 = scalar_select %p164, %s165, %s166
      %p170 = pneg %p164
      %p171 = scmp.eq.s32.totalorder %s30, 1
      %p172 = por %p170, %p171
      %p173 = scmp.ne.s32.totalorder %s165, %s168
      %p174 = scmp.eq.s32.totalorder %s30, 0
      %p175 = por %p173, %p174
      %p176 = scmp.ne.s32.totalorder %s165, %s168
      %p177 = scmp.eq.s32.totalorder %s35, 1
      %p178 = por %p176, %p177
      %p179 = scmp.ne.s32.totalorder %s168, %s169
      %p180 = scmp.eq.s32.totalorder %s35, 0
      %p181 = por %p179, %p180
      %p182 = scmp.ne.s32.totalorder %s168, %s169
      %p183 = scmp.eq.s32.totalorder %s36, 1
      %p184 = por %p182, %p183
      %p186 = scmp.ne.s32.totalorder %s169, %s185
      %p187 = scmp.eq.s32.totalorder %s36, 0
      %p188 = por %p186, %p187
      %s189 = ssub.s32 %s30, %s37
      %p190 = scmp.eq.s32.totalorder %s189, 0
      %s192 = sadd.s32 %s191, 1
      %s193 = scalar_select %p190, %s191, %s192
      %p196 = pneg %p190
      %p197 = scmp.eq.s32.totalorder %s30, 1
      %p198 = por %p196, %p197
      %p199 = scmp.ne.s32.totalorder %s191, %s194
      %p200 = scmp.eq.s32.totalorder %s30, 0
      %p201 = por %p199, %p200
      %p202 = scmp.ne.s32.totalorder %s191, %s194
      %p203 = scmp.eq.s32.totalorder %s35, 1
      %p204 = por %p202, %p203
      %p205 = scmp.ne.s32.totalorder %s194, %s195
      %p206 = scmp.eq.s32.totalorder %s35, 0
      %p207 = por %p205, %p206
      %p208 = scmp.ne.s32.totalorder %s194, %s195
      %p209 = scmp.eq.s32.totalorder %s36, 1
      %p210 = por %p208, %p209
      %p212 = scmp.ne.s32.totalorder %s195, %s211
      %p213 = scmp.eq.s32.totalorder %s36, 0
      %p214 = por %p212, %p213
      %s215 = ssub.s32 %s30, %s37
      %p216 = scmp.eq.s32.totalorder %s215, 0
      %s218 = sadd.s32 %s217, 1
      %s219 = scalar_select %p216, %s217, %s218
      %p222 = pneg %p216
      %p223 = scmp.eq.s32.totalorder %s30, 1
      %p224 = por %p222, %p223
      %p225 = scmp.ne.s32.totalorder %s217, %s220
      %p226 = scmp.eq.s32.totalorder %s30, 0
      %p227 = por %p225, %p226
      %p228 = scmp.ne.s32.totalorder %s217, %s220
      %p229 = scmp.eq.s32.totalorder %s35, 1
      %p230 = por %p228, %p229
      %p231 = scmp.ne.s32.totalorder %s220, %s221
      %p232 = scmp.eq.s32.totalorder %s35, 0
      %p233 = por %p231, %p232
      %p234 = scmp.ne.s32.totalorder %s220, %s221
      %p235 = scmp.eq.s32.totalorder %s36, 1
      %p236 = por %p234, %p235
      %p238 = scmp.ne.s32.totalorder %s221, %s237
      %p239 = scmp.eq.s32.totalorder %s36, 0
      %p240 = por %p238, %p239
      %s241 = ssub.s32 %s30, %s37
      %p242 = scmp.eq.s32.totalorder %s241, 0
      %s244 = sadd.s32 %s243, 1
      %s245 = scalar_select %p242, %s243, %s244
      %p248 = pneg %p242
      %p249 = scmp.eq.s32.totalorder %s30, 1
      %p250 = por %p248, %p249
      %p251 = scmp.ne.s32.totalorder %s243, %s246
      %p252 = scmp.eq.s32.totalorder %s30, 0
      %p253 = por %p251, %p252
      %p254 = scmp.ne.s32.totalorder %s243, %s246
      %p255 = scmp.eq.s32.totalorder %s35, 1
      %p256 = por %p254, %p255
      %p257 = scmp.ne.s32.totalorder %s246, %s247
      %p258 = scmp.eq.s32.totalorder %s35, 0
      %p259 = por %p257, %p258
      %p260 = scmp.ne.s32.totalorder %s246, %s247
      %p261 = scmp.eq.s32.totalorder %s36, 1
      %p262 = por %p260, %p261
      %p264 = scmp.ne.s32.totalorder %s247, %s263
      %p265 = scmp.eq.s32.totalorder %s36, 0
      %p266 = por %p264, %p265
      %s267 = ssub.s32 %s30, %s37
      %p268 = scmp.eq.s32.totalorder %s267, 0
      %s270 = sadd.s32 %s269, 1
      %s271 = scalar_select %p268, %s269, %s270
      %p274 = pneg %p268
      %p275 = scmp.eq.s32.totalorder %s30, 1
      %p276 = por %p274, %p275
      %p277 = scmp.ne.s32.totalorder %s269, %s272
      %p278 = scmp.eq.s32.totalorder %s30, 0
      %p279 = por %p277, %p278
      %p280 = scmp.ne.s32.totalorder %s269, %s272
      %p281 = scmp.eq.s32.totalorder %s35, 1
      %p282 = por %p280, %p281
      %p283 = scmp.ne.s32.totalorder %s272, %s273
      %p284 = scmp.eq.s32.totalorder %s35, 0
      %p285 = por %p283, %p284
      %p286 = scmp.ne.s32.totalorder %s272, %s273
      %p287 = scmp.eq.s32.totalorder %s36, 1
      %p288 = por %p286, %p287
      %p290 = scmp.ne.s32.totalorder %s273, %s289
      %p291 = scmp.eq.s32.totalorder %s36, 0
      %p292 = por %p290, %p291
      %p293 = scmp.le.s32.totalorder 1, %s30
      %p294 = scmp.lt.s32.totalorder %s30, 3
      %p295 = pnand %p293, %p294
      %p296 = pneg %p295
      // Predicated region
      $region9: #{_forward_impl.1} parent=5 // pred_check
        _
      $region10: #{_forward_impl.1} parent=5 // pred_check_branch
        %298 = sbr.rel (%p295) target = $region12
      $region11: #{_forward_impl.1} parent=5 // pred_region
        %s299 = ssub.s32 %s30, 1
        // Predicated region
        $region13: #{_forward_impl.1} parent=11 // pred_check
          %p300 = pneg %p51
        $region14: #{_forward_impl.1} parent=11 // pred_check_branch
          %302 = sbr.rel (%p300) target = $region16
        $region15: #{_forward_impl.1} parent=11 // pred_region
          _
        $region16: #{_forward_impl.1} parent=11 // pred_fallthru
          _
      $region12: #{_forward_impl.1} parent=5 // pred_fallthru
        _
      %p303 = scmp.lt.s32.totalorder %s30, 2
      // Predicated region
      $region17: #{_forward_impl.1} parent=5 // pred_check
        %p304 = pneg %p303
      $region18: #{_forward_impl.1} parent=5 // pred_check_branch
        %306 = sbr.rel (%p304) target = $region20
      $region19: #{_forward_impl.1} parent=5 // pred_region
        // Predicated region
        $region21: #{_forward_impl.1} parent=19 // pred_check
          %p307 = pneg %p71
        $region22: #{_forward_impl.1} parent=19 // pred_check_branch
          %309 = sbr.rel (%p307) target = $region24
        $region23: #{_forward_impl.1} parent=19 // pred_region
          %s310 = sand.u32 %s61, 1
          %s311 = scalar_lea.sflag [#allocation3], %s310
          %s312 = sand.u32 %s61, 1
          %s313 = smul.addr %s312, 1152
          %s314 = scalar_lea.vmem [#allocation2], %s313
          %s316 = ssub.s32 18432, 18432
          %317 = vsyncadd %s311, %s316
          %s318 = smul.addr %s30, 144
          %s319 = smul.addr %s318, 128
          %s320 = scalar_lea.hbm %s1, %s319
          %s321 = sshll.u32 %s314, 4
          %s322 = int_to_ptr.vmem [resolvable:$true] %s321
          %327 = dma.hbm_to_vmem [thread:$0]  %s320, 18432, %s322, %s311, 128, 128, 8
        $region24: #{_forward_impl.1} parent=19 // pred_fallthru
          _
        // Predicated region
        $region25: #{_forward_impl.1} parent=19 // pred_check
          %p328 = pneg %p97
        $region26: #{_forward_impl.1} parent=19 // pred_check_branch
          %330 = sbr.rel (%p328) target = $region28
        $region27: #{_forward_impl.1} parent=19 // pred_region
          %s331 = sand.u32 %s30, 1
          %s332 = scalar_lea.sflag [#allocation5], %s331
          %s333 = sand.u32 %s87, 1
          %s334 = scalar_lea.vmem [#allocation4], %s333
          %s336 = ssub.s32 16, 16
          %337 = vsyncadd %s332, %s336
          %s338 = smul.addr %s30, 16
          %s339 = scalar_lea.hbm %s2, %s338
          %s341 = sshll.u32 %s334, 4
          %s342 = int_to_ptr.vmem [resolvable:$true] %s341
          %344 = dma.hbm_to_vmem [thread:$0]  %s339, 16, %s342, %s332
        $region28: #{_forward_impl.1} parent=19 // pred_fallthru
          _
        // Predicated region
        $region29: #{_forward_impl.1} parent=19 // pred_check
          %p345 = pneg %p123
        $region30: #{_forward_impl.1} parent=19 // pred_check_branch
          %347 = sbr.rel (%p345) target = $region32
        $region31: #{_forward_impl.1} parent=19 // pred_region
          %s348 = sand.u32 %s30, 1
          %s349 = scalar_lea.sflag [#allocation5], %s348
          %s350 = sand.u32 %s113, 1
          %s351 = smul.addr %s350, 128
          %s352 = scalar_lea.vmem [#allocation6], %s351
          %s354 = ssub.s32 2048, 2048
          %355 = vsyncadd %s349, %s354
          %s356 = smul.addr %s30, 16
          %s357 = smul.addr %s356, 128
          %s358 = scalar_lea.hbm %s3, %s357
          %s359 = sshll.u32 %s352, 4
          %s360 = int_to_ptr.vmem [resolvable:$true] %s359
          %365 = dma.hbm_to_vmem [thread:$0]  %s358, 2048, %s360, %s349, 128, 128, 8
        $region32: #{_forward_impl.1} parent=19 // pred_fallthru
          _
        // Predicated region
        $region33: #{_forward_impl.1} parent=19 // pred_check
          %p366 = pneg %p149
        $region34: #{_forward_impl.1} parent=19 // pred_check_branch
          %368 = sbr.rel (%p366) target = $region36
        $region35: #{_forward_impl.1} parent=19 // pred_region
          %s369 = sand.u32 %s30, 1
          %s370 = scalar_lea.sflag [#allocation8], %s369
          %s371 = sand.u32 %s139, 1
          %s372 = scalar_lea.vmem [#allocation7], %s371
          %s374 = ssub.s32 16, 16
          %375 = vsyncadd %s370, %s374
          %s376 = smul.addr %s30, 16
          %s377 = scalar_lea.hbm %s4, %s376
          %s379 = sshll.u32 %s372, 4
          %s380 = int_to_ptr.vmem [resolvable:$true] %s379
          %382 = dma.hbm_to_vmem [thread:$0]  %s377, 16, %s380, %s370
        $region36: #{_forward_impl.1} parent=19 // pred_fallthru
          _
        // Predicated region
        $region37: #{_forward_impl.1} parent=19 // pred_check
          %p383 = pneg %p175
        $region38: #{_forward_impl.1} parent=19 // pred_check_branch
          %385 = sbr.rel (%p383) target = $region40
        $region39: #{_forward_impl.1} parent=19 // pred_region
          %s386 = sand.u32 %s30, 1
          %s387 = scalar_lea.sflag [#allocation8], %s386
          %s388 = sand.u32 %s165, 1
          %s389 = smul.addr %s388, 128
          %s390 = scalar_lea.vmem [#allocation9], %s389
          %s392 = ssub.s32 2048, 2048
          %393 = vsyncadd %s387, %s392
          %s394 = smul.addr %s30, 16
          %s395 = smul.addr %s394, 128
          %s396 = scalar_lea.hbm %s5, %s395
          %s397 = sshll.u32 %s390, 4
          %s398 = int_to_ptr.vmem [resolvable:$true] %s397
          %403 = dma.hbm_to_vmem [thread:$0]  %s396, 2048, %s398, %s387, 128, 128, 8
        $region40: #{_forward_impl.1} parent=19 // pred_fallthru
          _
        // Predicated region
        $region41: #{_forward_impl.1} parent=19 // pred_check
          %p404 = pneg %p201
        $region42: #{_forward_impl.1} parent=19 // pred_check_branch
          %406 = sbr.rel (%p404) target = $region44
        $region43: #{_forward_impl.1} parent=19 // pred_region
          %s407 = sand.u32 %s30, 1
          %s408 = scalar_lea.sflag [#allocation11], %s407
          %s409 = sand.u32 %s191, 1
          %s410 = scalar_lea.vmem [#allocation10], %s409
          %s412 = ssub.s32 16, 16
          %413 = vsyncadd %s408, %s412
          %s414 = smul.addr %s30, 16
          %s415 = scalar_lea.hbm %s6, %s414
          %s417 = sshll.u32 %s410, 4
          %s418 = int_to_ptr.vmem [resolvable:$true] %s417
          %420 = dma.hbm_to_vmem [thread:$0]  %s415, 16, %s418, %s408
        $region44: #{_forward_impl.1} parent=19 // pred_fallthru
          _
        // Predicated region
        $region45: #{_forward_impl.1} parent=19 // pred_check
          %p421 = pneg %p227
        $region46: #{_forward_impl.1} parent=19 // pred_check_branch
          %423 = sbr.rel (%p421) target = $region48
        $region47: #{_forward_impl.1} parent=19 // pred_region
          %s424 = sand.u32 %s30, 1
          %s425 = scalar_lea.sflag [#allocation11], %s424
          %s426 = sand.u32 %s217, 1
          %s427 = smul.addr %s426, 128
          %s428 = scalar_lea.vmem [#allocation12], %s427
          %s430 = ssub.s32 2048, 2048
          %431 = vsyncadd %s425, %s430
          %s432 = smul.addr %s30, 16
          %s433 = smul.addr %s432, 128
          %s434 = scalar_lea.hbm %s7, %s433
          %s435 = sshll.u32 %s428, 4
          %s436 = int_to_ptr.vmem [resolvable:$true] %s435
          %441 = dma.hbm_to_vmem [thread:$0]  %s434, 2048, %s436, %s425, 128, 128, 8
        $region48: #{_forward_impl.1} parent=19 // pred_fallthru
          _
        // Predicated region
        $region49: #{_forward_impl.1} parent=19 // pred_check
          %p442 = pneg %p253
        $region50: #{_forward_impl.1} parent=19 // pred_check_branch
          %444 = sbr.rel (%p442) target = $region52
        $region51: #{_forward_impl.1} parent=19 // pred_region
          %s445 = sand.u32 %s243, 1
          %s446 = scalar_lea.sflag [#allocation14], %s445
          %s447 = sand.u32 %s243, 1
          %s448 = scalar_lea.vmem [#allocation13], %s447
          %s450 = ssub.s32 16, 16
          %451 = vsyncadd %s446, %s450
          %s452 = smul.addr %s30, 16
          %s453 = scalar_lea.hbm %s8, %s452
          %s455 = sshll.u32 %s448, 4
          %s456 = int_to_ptr.vmem [resolvable:$true] %s455
          %458 = dma.hbm_to_vmem [thread:$0]  %s453, 16, %s456, %s446
        $region52: #{_forward_impl.1} parent=19 // pred_fallthru
          _
      $region20: #{_forward_impl.1} parent=5 // pred_fallthru
        _
      %p459 = scmp.le.s32.totalorder 1, %s30
      %p460 = scmp.lt.s32.totalorder %s30, 3
      %p461 = pnand %p459, %p460
      %p462 = pneg %p461
      // Predicated region
      $region53: #{_forward_impl.1} parent=5 // pred_check
        _
      $region54: #{_forward_impl.1} parent=5 // pred_check_branch
        %464 = sbr.rel (%p461) target = $region56
      $region55: #{_forward_impl.1} parent=5 // pred_region
        %s465 = ssub.s32 %s30, 1
        %s466 = sand.u32 %s64, 1
        %s467 = scalar_lea.sflag [#allocation3], %s466
        %s468 = sand.u32 %s64, 1
        %s469 = smul.addr %s468, 1152
        %s470 = scalar_lea.vmem [#allocation2], %s469
        // Predicated region
        $region57: #{_forward_impl.1} parent=55 // pred_check
          %p471 = pneg %p77
        $region58: #{_forward_impl.1} parent=55 // pred_check_branch
          %473 = sbr.rel (%p471) target = $region60
        $region59: #{_forward_impl.1} parent=55 // pred_region
          %474 = dma.done %s467, 18432
        $region60: #{_forward_impl.1} parent=55 // pred_fallthru
          _
        %s475 = sand.u32 %s35, 1
        %s476 = scalar_lea.sflag [#allocation5], %s475
        %s477 = sand.u32 %s90, 1
        %s478 = scalar_lea.vmem [#allocation4], %s477
        // Predicated region
        $region61: #{_forward_impl.1} parent=55 // pred_check
          %p479 = pneg %p103
        $region62: #{_forward_impl.1} parent=55 // pred_check_branch
          %481 = sbr.rel (%p479) target = $region64
        $region63: #{_forward_impl.1} parent=55 // pred_region
          %482 = dma.done %s476, 16
        $region64: #{_forward_impl.1} parent=55 // pred_fallthru
          _
        %s483 = sand.u32 %s35, 1
        %s484 = scalar_lea.sflag [#allocation5], %s483
        %s485 = sand.u32 %s116, 1
        %s486 = smul.addr %s485, 128
        %s487 = scalar_lea.vmem [#allocation6], %s486
        // Predicated region
        $region65: #{_forward_impl.1} parent=55 // pred_check
          %p488 = pneg %p129
        $region66: #{_forward_impl.1} parent=55 // pred_check_branch
          %490 = sbr.rel (%p488) target = $region68
        $region67: #{_forward_impl.1} parent=55 // pred_region
          %491 = dma.done %s484, 2048
        $region68: #{_forward_impl.1} parent=55 // pred_fallthru
          _
        %s492 = sand.u32 %s35, 1
        %s493 = scalar_lea.sflag [#allocation8], %s492
        %s494 = sand.u32 %s142, 1
        %s495 = scalar_lea.vmem [#allocation7], %s494
        // Predicated region
        $region69: #{_forward_impl.1} parent=55 // pred_check
          %p496 = pneg %p155
        $region70: #{_forward_impl.1} parent=55 // pred_check_branch
          %498 = sbr.rel (%p496) target = $region72
        $region71: #{_forward_impl.1} parent=55 // pred_region
          %499 = dma.done %s493, 16
        $region72: #{_forward_impl.1} parent=55 // pred_fallthru
          _
        %s500 = sand.u32 %s35, 1
        %s501 = scalar_lea.sflag [#allocation8], %s500
        %s502 = sand.u32 %s168, 1
        %s503 = smul.addr %s502, 128
        %s504 = scalar_lea.vmem [#allocation9], %s503
        // Predicated region
        $region73: #{_forward_impl.1} parent=55 // pred_check
          %p505 = pneg %p181
        $region74: #{_forward_impl.1} parent=55 // pred_check_branch
          %507 = sbr.rel (%p505) target = $region76
        $region75: #{_forward_impl.1} parent=55 // pred_region
          %508 = dma.done %s501, 2048
        $region76: #{_forward_impl.1} parent=55 // pred_fallthru
          _
        %s509 = sand.u32 %s35, 1
        %s510 = scalar_lea.sflag [#allocation11], %s509
        %s511 = sand.u32 %s194, 1
        %s512 = scalar_lea.vmem [#allocation10], %s511
        // Predicated region
        $region77: #{_forward_impl.1} parent=55 // pred_check
          %p513 = pneg %p207
        $region78: #{_forward_impl.1} parent=55 // pred_check_branch
          %515 = sbr.rel (%p513) target = $region80
        $region79: #{_forward_impl.1} parent=55 // pred_region
          %516 = dma.done %s510, 16
        $region80: #{_forward_impl.1} parent=55 // pred_fallthru
          _
        %s517 = sand.u32 %s35, 1
        %s518 = scalar_lea.sflag [#allocation11], %s517
        %s519 = sand.u32 %s220, 1
        %s520 = smul.addr %s519, 128
        %s521 = scalar_lea.vmem [#allocation12], %s520
        // Predicated region
        $region81: #{_forward_impl.1} parent=55 // pred_check
          %p522 = pneg %p233
        $region82: #{_forward_impl.1} parent=55 // pred_check_branch
          %524 = sbr.rel (%p522) target = $region84
        $region83: #{_forward_impl.1} parent=55 // pred_region
          %525 = dma.done %s518, 2048
        $region84: #{_forward_impl.1} parent=55 // pred_fallthru
          _
        %s526 = sand.u32 %s246, 1
        %s527 = scalar_lea.sflag [#allocation14], %s526
        %s528 = sand.u32 %s246, 1
        %s529 = scalar_lea.vmem [#allocation13], %s528
        // Predicated region
        $region85: #{_forward_impl.1} parent=55 // pred_check
          %p530 = pneg %p259
        $region86: #{_forward_impl.1} parent=55 // pred_check_branch
          %532 = sbr.rel (%p530) target = $region88
        $region87: #{_forward_impl.1} parent=55 // pred_region
          %533 = dma.done %s527, 16
        $region88: #{_forward_impl.1} parent=55 // pred_fallthru
          _
        %p534 = pneg %p51
        %p535 = pneg %p48
        %s536 = sand.u32 %s64, 1
        %s537 = scalar_lea.sflag [#allocation3], %s536
        %s538 = sand.u32 %s64, 1
        %s539 = smul.addr %s538, 1152
        %s540 = scalar_lea.vmem [#allocation2], %s539
        %p541 = pneg %p77
        %p542 = pneg %p74
        %s543 = sand.u32 %s35, 1
        %s544 = scalar_lea.sflag [#allocation5], %s543
        %s545 = sand.u32 %s90, 1
        %s546 = scalar_lea.vmem [#allocation4], %s545
        %p547 = pneg %p103
        %p548 = pneg %p100
        %s549 = sand.u32 %s35, 1
        %s550 = scalar_lea.sflag [#allocation5], %s549
        %s551 = sand.u32 %s116, 1
        %s552 = smul.addr %s551, 128
        %s553 = scalar_lea.vmem [#allocation6], %s552
        %p554 = pneg %p129
        %p555 = pneg %p126
        %s556 = sand.u32 %s35, 1
        %s557 = scalar_lea.sflag [#allocation8], %s556
        %s558 = sand.u32 %s142, 1
        %s559 = scalar_lea.vmem [#allocation7], %s558
        %p560 = pneg %p155
        %p561 = pneg %p152
        %s562 = sand.u32 %s35, 1
        %s563 = scalar_lea.sflag [#allocation8], %s562
        %s564 = sand.u32 %s168, 1
        %s565 = smul.addr %s564, 128
        %s566 = scalar_lea.vmem [#allocation9], %s565
        %p567 = pneg %p181
        %p568 = pneg %p178
        %s569 = sand.u32 %s35, 1
        %s570 = scalar_lea.sflag [#allocation11], %s569
        %s571 = sand.u32 %s194, 1
        %s572 = scalar_lea.vmem [#allocation10], %s571
        %p573 = pneg %p207
        %p574 = pneg %p204
        %s575 = sand.u32 %s35, 1
        %s576 = scalar_lea.sflag [#allocation11], %s575
        %s577 = sand.u32 %s220, 1
        %s578 = smul.addr %s577, 128
        %s579 = scalar_lea.vmem [#allocation12], %s578
        %p580 = pneg %p233
        %p581 = pneg %p230
        %s582 = sand.u32 %s246, 1
        %s583 = scalar_lea.sflag [#allocation14], %s582
        %s584 = sand.u32 %s246, 1
        %s585 = scalar_lea.vmem [#allocation13], %s584
        %p586 = pneg %p259
        %p587 = pneg %p256
        %p588 = pneg %p285
        %p589 = pneg %p282
        %p590 = scmp.lt.s32.totalorder %s35, 1
        %s591 = scalar_select %p590, %s35, 1
        %s592 = smul.addr %s591, 8
        %s593 = scalar_lea.vmem %s9, %s592
        %p594 = scmp.lt.s32.totalorder %s35, 1
        %s595 = scalar_select %p594, %s35, 1
        %s596 = smul.addr %s595, 8
        %s597 = scalar_lea.vmem %s9, %s596
        %v598 = vld [vmem:[%s0] sm:$0xff]
        %v599 = vld [vmem:[%s0 + $0x8] sm:$0xff]
        %v600 = vld [vmem:[%s0 + $0x10] sm:$0xff]
        %v601 = vld [vmem:[%s0 + $0x18] sm:$0xff]
        %v602 = vld [vmem:[%s0 + $0x20] sm:$0xff]
        %v603 = vld [vmem:[%s0 + $0x28] sm:$0xff]
        %v604 = vld [vmem:[%s0 + $0x30] sm:$0xff]
        %v605 = vld [vmem:[%s0 + $0x38] sm:$0xff]
        %v606 = vld [vmem:[%s0 + $0x40] sm:$0xff]
        %v607 = vld [vmem:[%s470] sm:$0xff]
        %v608 = vld [vmem:[%s470 + $0x8] sm:$0xff]
        %v609 = vld [vmem:[%s470 + $0x10] sm:$0xff]
        %v610 = vld [vmem:[%s470 + $0x18] sm:$0xff]
        %v611 = vld [vmem:[%s470 + $0x20] sm:$0xff]
        %v612 = vld [vmem:[%s470 + $0x28] sm:$0xff]
        %v613 = vld [vmem:[%s470 + $0x30] sm:$0xff]
        %v614 = vld [vmem:[%s470 + $0x38] sm:$0xff]
        %v615 = vld [vmem:[%s470 + $0x40] sm:$0xff]
        %v616 = vld [vmem:[%s470 + $0x48] sm:$0xff]
        %v617 = vld [vmem:[%s470 + $0x50] sm:$0xff]
        %v618 = vld [vmem:[%s470 + $0x58] sm:$0xff]
        %v619 = vld [vmem:[%s470 + $0x60] sm:$0xff]
        %v620 = vld [vmem:[%s470 + $0x68] sm:$0xff]
        %v621 = vld [vmem:[%s470 + $0x70] sm:$0xff]
        %v622 = vld [vmem:[%s470 + $0x78] sm:$0xff]
        %v623 = vld [vmem:[%s470 + $0x80] sm:$0xff]
        %v624 = vld [vmem:[%s470 + $0x88] sm:$0xff]
        %v625 = vld [vmem:[%s470 + $0x90] sm:$0xff]
        %v626 = vld [vmem:[%s470 + $0x98] sm:$0xff]
        %v627 = vld [vmem:[%s470 + $0xa0] sm:$0xff]
        %v628 = vld [vmem:[%s470 + $0xa8] sm:$0xff]
        %v629 = vld [vmem:[%s470 + $0xb0] sm:$0xff]
        %v630 = vld [vmem:[%s470 + $0xb8] sm:$0xff]
        %v631 = vld [vmem:[%s470 + $0xc0] sm:$0xff]
        %v632 = vld [vmem:[%s470 + $0xc8] sm:$0xff]
        %v633 = vld [vmem:[%s470 + $0xd0] sm:$0xff]
        %v634 = vld [vmem:[%s470 + $0xd8] sm:$0xff]
        %v635 = vld [vmem:[%s470 + $0xe0] sm:$0xff]
        %v636 = vld [vmem:[%s470 + $0xe8] sm:$0xff]
        %v637 = vld [vmem:[%s470 + $0xf0] sm:$0xff]
        %v638 = vld [vmem:[%s470 + $0xf8] sm:$0xff]
        %v639 = vld [vmem:[%s470 + $0x100] sm:$0xff]
        %v640 = vld [vmem:[%s470 + $0x108] sm:$0xff]
        %v641 = vld [vmem:[%s470 + $0x110] sm:$0xff]
        %v642 = vld [vmem:[%s470 + $0x118] sm:$0xff]
        %v643 = vld [vmem:[%s470 + $0x120] sm:$0xff]
        %v644 = vld [vmem:[%s470 + $0x128] sm:$0xff]
        %v645 = vld [vmem:[%s470 + $0x130] sm:$0xff]
        %v646 = vld [vmem:[%s470 + $0x138] sm:$0xff]
        %v647 = vld [vmem:[%s470 + $0x140] sm:$0xff]
        %v648 = vld [vmem:[%s470 + $0x148] sm:$0xff]
        %v649 = vld [vmem:[%s470 + $0x150] sm:$0xff]
        %v650 = vld [vmem:[%s470 + $0x158] sm:$0xff]
        %v651 = vld [vmem:[%s470 + $0x160] sm:$0xff]
        %v652 = vld [vmem:[%s470 + $0x168] sm:$0xff]
        %v653 = vld [vmem:[%s470 + $0x170] sm:$0xff]
        %v654 = vld [vmem:[%s470 + $0x178] sm:$0xff]
        %v655 = vld [vmem:[%s470 + $0x180] sm:$0xff]
        %v656 = vld [vmem:[%s470 + $0x188] sm:$0xff]
        %v657 = vld [vmem:[%s470 + $0x190] sm:$0xff]
        %v658 = vld [vmem:[%s470 + $0x198] sm:$0xff]
        %v659 = vld [vmem:[%s470 + $0x1a0] sm:$0xff]
        %v660 = vld [vmem:[%s470 + $0x1a8] sm:$0xff]
        %v661 = vld [vmem:[%s470 + $0x1b0] sm:$0xff]
        %v662 = vld [vmem:[%s470 + $0x1b8] sm:$0xff]
        %v663 = vld [vmem:[%s470 + $0x1c0] sm:$0xff]
        %v664 = vld [vmem:[%s470 + $0x1c8] sm:$0xff]
        %v665 = vld [vmem:[%s470 + $0x1d0] sm:$0xff]
        %v666 = vld [vmem:[%s470 + $0x1d8] sm:$0xff]
        %v667 = vld [vmem:[%s470 + $0x1e0] sm:$0xff]
        %v668 = vld [vmem:[%s470 + $0x1e8] sm:$0xff]
        %v669 = vld [vmem:[%s470 + $0x1f0] sm:$0xff]
        %v670 = vld [vmem:[%s470 + $0x1f8] sm:$0xff]
        %v671 = vld [vmem:[%s470 + $0x200] sm:$0xff]
        %v672 = vld [vmem:[%s470 + $0x208] sm:$0xff]
        %v673 = vld [vmem:[%s470 + $0x210] sm:$0xff]
        %v674 = vld [vmem:[%s470 + $0x218] sm:$0xff]
        %v675 = vld [vmem:[%s470 + $0x220] sm:$0xff]
        %v676 = vld [vmem:[%s470 + $0x228] sm:$0xff]
        %v677 = vld [vmem:[%s470 + $0x230] sm:$0xff]
        %v678 = vld [vmem:[%s470 + $0x238] sm:$0xff]
        %v679 = vld [vmem:[%s470 + $0x240] sm:$0xff]
        %v680 = vld [vmem:[%s470 + $0x248] sm:$0xff]
        %v681 = vld [vmem:[%s470 + $0x250] sm:$0xff]
        %v682 = vld [vmem:[%s470 + $0x258] sm:$0xff]
        %v683 = vld [vmem:[%s470 + $0x260] sm:$0xff]
        %v684 = vld [vmem:[%s470 + $0x268] sm:$0xff]
        %v685 = vld [vmem:[%s470 + $0x270] sm:$0xff]
        %v686 = vld [vmem:[%s470 + $0x278] sm:$0xff]
        %v687 = vld [vmem:[%s470 + $0x280] sm:$0xff]
        %v688 = vld [vmem:[%s470 + $0x288] sm:$0xff]
        %v689 = vld [vmem:[%s470 + $0x290] sm:$0xff]
        %v690 = vld [vmem:[%s470 + $0x298] sm:$0xff]
        %v691 = vld [vmem:[%s470 + $0x2a0] sm:$0xff]
        %v692 = vld [vmem:[%s470 + $0x2a8] sm:$0xff]
        %v693 = vld [vmem:[%s470 + $0x2b0] sm:$0xff]
        %v694 = vld [vmem:[%s470 + $0x2b8] sm:$0xff]
        %v695 = vld [vmem:[%s470 + $0x2c0] sm:$0xff]
        %v696 = vld [vmem:[%s470 + $0x2c8] sm:$0xff]
        %v697 = vld [vmem:[%s470 + $0x2d0] sm:$0xff]
        %v698 = vld [vmem:[%s470 + $0x2d8] sm:$0xff]
        %v699 = vld [vmem:[%s470 + $0x2e0] sm:$0xff]
        %v700 = vld [vmem:[%s470 + $0x2e8] sm:$0xff]
        %v701 = vld [vmem:[%s470 + $0x2f0] sm:$0xff]
        %v702 = vld [vmem:[%s470 + $0x2f8] sm:$0xff]
        %v703 = vld [vmem:[%s470 + $0x300] sm:$0xff]
        %v704 = vld [vmem:[%s470 + $0x308] sm:$0xff]
        %v705 = vld [vmem:[%s470 + $0x310] sm:$0xff]
        %v706 = vld [vmem:[%s470 + $0x318] sm:$0xff]
        %v707 = vld [vmem:[%s470 + $0x320] sm:$0xff]
        %v708 = vld [vmem:[%s470 + $0x328] sm:$0xff]
        %v709 = vld [vmem:[%s470 + $0x330] sm:$0xff]
        %v710 = vld [vmem:[%s470 + $0x338] sm:$0xff]
        %v711 = vld [vmem:[%s470 + $0x340] sm:$0xff]
        %v712 = vld [vmem:[%s470 + $0x348] sm:$0xff]
        %v713 = vld [vmem:[%s470 + $0x350] sm:$0xff]
        %v714 = vld [vmem:[%s470 + $0x358] sm:$0xff]
        %v715 = vld [vmem:[%s470 + $0x360] sm:$0xff]
        %v716 = vld [vmem:[%s470 + $0x368] sm:$0xff]
        %v717 = vld [vmem:[%s470 + $0x370] sm:$0xff]
        %v718 = vld [vmem:[%s470 + $0x378] sm:$0xff]
        %v719 = vld [vmem:[%s470 + $0x380] sm:$0xff]
        %v720 = vld [vmem:[%s470 + $0x388] sm:$0xff]
        %v721 = vld [vmem:[%s470 + $0x390] sm:$0xff]
        %v722 = vld [vmem:[%s470 + $0x398] sm:$0xff]
        %v723 = vld [vmem:[%s470 + $0x3a0] sm:$0xff]
        %v724 = vld [vmem:[%s470 + $0x3a8] sm:$0xff]
        %v725 = vld [vmem:[%s470 + $0x3b0] sm:$0xff]
        %v726 = vld [vmem:[%s470 + $0x3b8] sm:$0xff]
        %v727 = vld [vmem:[%s470 + $0x3c0] sm:$0xff]
        %v728 = vld [vmem:[%s470 + $0x3c8] sm:$0xff]
        %v729 = vld [vmem:[%s470 + $0x3d0] sm:$0xff]
        %v730 = vld [vmem:[%s470 + $0x3d8] sm:$0xff]
        %v731 = vld [vmem:[%s470 + $0x3e0] sm:$0xff]
        %v732 = vld [vmem:[%s470 + $0x3e8] sm:$0xff]
        %v733 = vld [vmem:[%s470 + $0x3f0] sm:$0xff]
        %v734 = vld [vmem:[%s470 + $0x3f8] sm:$0xff]
        %v735 = vld [vmem:[%s470 + $0x400] sm:$0xff]
        %v736 = vld [vmem:[%s470 + $0x408] sm:$0xff]
        %v737 = vld [vmem:[%s470 + $0x410] sm:$0xff]
        %v738 = vld [vmem:[%s470 + $0x418] sm:$0xff]
        %v739 = vld [vmem:[%s470 + $0x420] sm:$0xff]
        %v740 = vld [vmem:[%s470 + $0x428] sm:$0xff]
        %v741 = vld [vmem:[%s470 + $0x430] sm:$0xff]
        %v742 = vld [vmem:[%s470 + $0x438] sm:$0xff]
        %v743 = vld [vmem:[%s470 + $0x440] sm:$0xff]
        %v744 = vld [vmem:[%s470 + $0x448] sm:$0xff]
        %v745 = vld [vmem:[%s470 + $0x450] sm:$0xff]
        %v746 = vld [vmem:[%s470 + $0x458] sm:$0xff]
        %v747 = vld [vmem:[%s470 + $0x460] sm:$0xff]
        %v748 = vld [vmem:[%s470 + $0x468] sm:$0xff]
        %v749 = vld [vmem:[%s470 + $0x470] sm:$0xff]
        %v750 = vld [vmem:[%s470 + $0x478] sm:$0xff]
        %v751 = vld [vmem:[%s478] sm:$0x1]
        %v753 = vlaneseq
        %v754 = vshrl.u32 %v753, 7
        %v755 = vsub.s32 0, %v754
        %v756 = vrot.slane %v751, %v755
        %758 = vmatprep.subr.mxu0 0.0
        %759 = vmatpush1.msra.mxu0 %v607
        %760 = vmatprep.subr.mxu0 0.0
        %761 = vmatpush1.msra.mxu0 %v608
        %762 = vmatprep.subr.mxu0 0.0
        %763 = vmatpush1.msra.mxu0 %v609
        %764 = vmatprep.subr.mxu0 0.0
        %765 = vmatpush1.msra.mxu0 %v610
        %766 = vmatprep.subr.mxu0 0.0
        %767 = vmatpush1.msra.mxu0 %v611
        %768 = vmatprep.subr.mxu0 0.0
        %769 = vmatpush1.msra.mxu0 %v612
        %770 = vmatprep.subr.mxu0 0.0
        %771 = vmatpush1.msra.mxu0 %v613
        %772 = vmatprep.subr.mxu0 0.0
        %773 = vmatpush1.msra.mxu0 %v614
        %774 = vmatprep.subr.mxu0 0.0
        %775 = vmatpush1.msra.mxu0 %v615
        %776 = vmatprep.subr.mxu0 0.0
        %777 = vmatpush1.msra.mxu0 %v616
        %778 = vmatprep.subr.mxu0 0.0
        %779 = vmatpush1.msra.mxu0 %v617
        %780 = vmatprep.subr.mxu0 0.0
        %781 = vmatpush1.msra.mxu0 %v618
        %782 = vmatprep.subr.mxu0 0.0
        %783 = vmatpush1.msra.mxu0 %v619
        %784 = vmatprep.subr.mxu0 0.0
        %785 = vmatpush1.msra.mxu0 %v620
        %786 = vmatprep.subr.mxu0 0.0
        %787 = vmatpush1.msra.mxu0 %v621
        %788 = vmatprep.subr.mxu0 0.0
        %789 = vmatpush1.msra.mxu0 %v622
        %790 = vmatprep.subr.mxu0 0.0
        %791 = vmatpush1.msra.mxu0 %v623
        %792 = vmatprep.subr.mxu0 0.0
        %793 = vmatpush1.msra.mxu0 %v624
        %794 = vmatprep.subr.mxu0 0.0
        %795 = vmatpush1.msra.mxu0 %v625
        %796 = vmatprep.subr.mxu0 0.0
        %797 = vmatpush1.msra.mxu0 %v626
        %798 = vmatprep.subr.mxu0 0.0
        %799 = vmatpush1.msra.mxu0 %v627
        %800 = vmatprep.subr.mxu0 0.0
        %801 = vmatpush1.msra.mxu0 %v628
        %802 = vmatprep.subr.mxu0 0.0
        %803 = vmatpush1.msra.mxu0 %v629
        %804 = vmatprep.subr.mxu0 0.0
        %805 = vmatpush1.msra.mxu0 %v630
        %806 = vmatprep.subr.mxu0 0.0
        %807 = vmatpush1.msra.mxu0 %v631
        %808 = vmatprep.subr.mxu0 0.0
        %809 = vmatpush1.msra.mxu0 %v632
        %810 = vmatprep.subr.mxu0 0.0
        %811 = vmatpush1.msra.mxu0 %v633
        %812 = vmatprep.subr.mxu0 0.0
        %813 = vmatpush1.msra.mxu0 %v634
        %814 = vmatprep.subr.mxu0 0.0
        %815 = vmatpush1.msra.mxu0 %v635
        %816 = vmatprep.subr.mxu0 0.0
        %817 = vmatpush1.msra.mxu0 %v636
        %818 = vmatprep.subr.mxu0 0.0
        %819 = vmatpush1.msra.mxu0 %v637
        %820 = vmatprep.subr.mxu0 0.0
        %821 = vmatpush1.msra.mxu0 %v638
        %822 = vmatprep.mubr.f32.mxu0 %v599
        %823 = vmatmul.mubr.f32.gmra.mrb[0].mxu0 %v598
        %v824 = vpop.f32.mrb[0].mxu0
        %v825 = vadd.f32 %v756, %v824
        %v826 = vpop.f32.mrb[0].mxu0
        %827 = vdwg.mxu0
        %828 = vmatprep.subr.mxu0 0.0
        %829 = vmatpush1.msra.mxu0 %v639
        %830 = vmatprep.subr.mxu0 0.0
        %831 = vmatpush1.msra.mxu0 %v640
        %832 = vmatprep.subr.mxu0 0.0
        %833 = vmatpush1.msra.mxu0 %v641
        %834 = vmatprep.subr.mxu0 0.0
        %835 = vmatpush1.msra.mxu0 %v642
        %836 = vmatprep.subr.mxu0 0.0
        %837 = vmatpush1.msra.mxu0 %v643
        %838 = vmatprep.subr.mxu0 0.0
        %839 = vmatpush1.msra.mxu0 %v644
        %840 = vmatprep.subr.mxu0 0.0
        %841 = vmatpush1.msra.mxu0 %v645
        %842 = vmatprep.subr.mxu0 0.0
        %843 = vmatpush1.msra.mxu0 %v646
        %844 = vmatprep.subr.mxu0 0.0
        %845 = vmatpush1.msra.mxu0 %v647
        %846 = vmatprep.subr.mxu0 0.0
        %847 = vmatpush1.msra.mxu0 %v648
        %848 = vmatprep.subr.mxu0 0.0
        %849 = vmatpush1.msra.mxu0 %v649
        %850 = vmatprep.subr.mxu0 0.0
        %851 = vmatpush1.msra.mxu0 %v650
        %852 = vmatprep.subr.mxu0 0.0
        %853 = vmatpush1.msra.mxu0 %v651
        %854 = vmatprep.subr.mxu0 0.0
        %855 = vmatpush1.msra.mxu0 %v652
        %856 = vmatprep.subr.mxu0 0.0
        %857 = vmatpush1.msra.mxu0 %v653
        %858 = vmatprep.subr.mxu0 0.0
        %859 = vmatpush1.msra.mxu0 %v654
        %860 = vmatprep.subr.mxu0 0.0
        %861 = vmatpush1.msra.mxu0 %v655
        %862 = vmatprep.subr.mxu0 0.0
        %863 = vmatpush1.msra.mxu0 %v656
        %864 = vmatprep.subr.mxu0 0.0
        %865 = vmatpush1.msra.mxu0 %v657
        %866 = vmatprep.subr.mxu0 0.0
        %867 = vmatpush1.msra.mxu0 %v658
        %868 = vmatprep.subr.mxu0 0.0
        %869 = vmatpush1.msra.mxu0 %v659
        %870 = vmatprep.subr.mxu0 0.0
        %871 = vmatpush1.msra.mxu0 %v660
        %872 = vmatprep.subr.mxu0 0.0
        %873 = vmatpush1.msra.mxu0 %v661
        %874 = vmatprep.subr.mxu0 0.0
        %875 = vmatpush1.msra.mxu0 %v662
        %876 = vmatprep.subr.mxu0 0.0
        %877 = vmatpush1.msra.mxu0 %v663
        %878 = vmatprep.subr.mxu0 0.0
        %879 = vmatpush1.msra.mxu0 %v664
        %880 = vmatprep.subr.mxu0 0.0
        %881 = vmatpush1.msra.mxu0 %v665
        %882 = vmatprep.subr.mxu0 0.0
        %883 = vmatpush1.msra.mxu0 %v666
        %884 = vmatprep.subr.mxu0 0.0
        %885 = vmatpush1.msra.mxu0 %v667
        %886 = vmatprep.subr.mxu0 0.0
        %887 = vmatpush1.msra.mxu0 %v668
        %888 = vmatprep.subr.mxu0 0.0
        %889 = vmatpush1.msra.mxu0 %v669
        %890 = vmatprep.subr.mxu0 0.0
        %891 = vmatpush1.msra.mxu0 %v670
        %892 = vmatprep.mubr.f32.mxu0 %v601
        %893 = vmatmul.mubr.f32.gmra.mrb[0].mxu0 %v600
        %v894 = vpop.f32.mrb[0].mxu0
        %v895 = vadd.f32 %v825, %v894
        %v896 = vpop.f32.mrb[0].mxu0
        %897 = vdwg.mxu0
        %898 = vmatprep.subr.mxu0 0.0
        %899 = vmatpush1.msra.mxu0 %v671
        %900 = vmatprep.subr.mxu0 0.0
        %901 = vmatpush1.msra.mxu0 %v672
        %902 = vmatprep.subr.mxu0 0.0
        %903 = vmatpush1.msra.mxu0 %v673
        %904 = vmatprep.subr.mxu0 0.0
        %905 = vmatpush1.msra.mxu0 %v674
        %906 = vmatprep.subr.mxu0 0.0
        %907 = vmatpush1.msra.mxu0 %v675
        %908 = vmatprep.subr.mxu0 0.0
        %909 = vmatpush1.msra.mxu0 %v676
        %910 = vmatprep.subr.mxu0 0.0
        %911 = vmatpush1.msra.mxu0 %v677
        %912 = vmatprep.subr.mxu0 0.0
        %913 = vmatpush1.msra.mxu0 %v678
        %914 = vmatprep.subr.mxu0 0.0
        %915 = vmatpush1.msra.mxu0 %v679
        %916 = vmatprep.subr.mxu0 0.0
        %917 = vmatpush1.msra.mxu0 %v680
        %918 = vmatprep.subr.mxu0 0.0
        %919 = vmatpush1.msra.mxu0 %v681
        %920 = vmatprep.subr.mxu0 0.0
        %921 = vmatpush1.msra.mxu0 %v682
        %922 = vmatprep.subr.mxu0 0.0
        %923 = vmatpush1.msra.mxu0 %v683
        %924 = vmatprep.subr.mxu0 0.0
        %925 = vmatpush1.msra.mxu0 %v684
        %926 = vmatprep.subr.mxu0 0.0
        %927 = vmatpush1.msra.mxu0 %v685
        %928 = vmatprep.subr.mxu0 0.0
        %929 = vmatpush1.msra.mxu0 %v686
        %930 = vmatprep.subr.mxu0 0.0
        %931 = vmatpush1.msra.mxu0 %v687
        %932 = vmatprep.subr.mxu0 0.0
        %933 = vmatpush1.msra.mxu0 %v688
        %934 = vmatprep.subr.mxu0 0.0
        %935 = vmatpush1.msra.mxu0 %v689
        %936 = vmatprep.subr.mxu0 0.0
        %937 = vmatpush1.msra.mxu0 %v690
        %938 = vmatprep.subr.mxu0 0.0
        %939 = vmatpush1.msra.mxu0 %v691
        %940 = vmatprep.subr.mxu0 0.0
        %941 = vmatpush1.msra.mxu0 %v692
        %942 = vmatprep.subr.mxu0 0.0
        %943 = vmatpush1.msra.mxu0 %v693
        %944 = vmatprep.subr.mxu0 0.0
        %945 = vmatpush1.msra.mxu0 %v694
        %946 = vmatprep.subr.mxu0 0.0
        %947 = vmatpush1.msra.mxu0 %v695
        %948 = vmatprep.subr.mxu0 0.0
        %949 = vmatpush1.msra.mxu0 %v696
        %950 = vmatprep.subr.mxu0 0.0
        %951 = vmatpush1.msra.mxu0 %v697
        %952 = vmatprep.subr.mxu0 0.0
        %953 = vmatpush1.msra.mxu0 %v698
        %954 = vmatprep.subr.mxu0 0.0
        %955 = vmatpush1.msra.mxu0 %v699
        %956 = vmatprep.subr.mxu0 0.0
        %957 = vmatpush1.msra.mxu0 %v700
        %958 = vmatprep.subr.mxu0 0.0
        %959 = vmatpush1.msra.mxu0 %v701
        %960 = vmatprep.subr.mxu0 0.0
        %961 = vmatpush1.msra.mxu0 %v702
        %962 = vmatprep.mubr.f32.mxu0 %v603
        %963 = vmatmul.mubr.f32.gmra.mrb[0].mxu0 %v602
        %v964 = vpop.f32.mrb[0].mxu0
        %v965 = vadd.f32 %v895, %v964
        %v966 = vpop.f32.mrb[0].mxu0
        %967 = vdwg.mxu0
        %968 = vmatprep.subr.mxu0 0.0
        %969 = vmatpush1.msra.mxu0 %v703
        %970 = vmatprep.subr.mxu0 0.0
        %971 = vmatpush1.msra.mxu0 %v704
        %972 = vmatprep.subr.mxu0 0.0
        %973 = vmatpush1.msra.mxu0 %v705
        %974 = vmatprep.subr.mxu0 0.0
        %975 = vmatpush1.msra.mxu0 %v706
        %976 = vmatprep.subr.mxu0 0.0
        %977 = vmatpush1.msra.mxu0 %v707
        %978 = vmatprep.subr.mxu0 0.0
        %979 = vmatpush1.msra.mxu0 %v708
        %980 = vmatprep.subr.mxu0 0.0
        %981 = vmatpush1.msra.mxu0 %v709
        %982 = vmatprep.subr.mxu0 0.0
        %983 = vmatpush1.msra.mxu0 %v710
        %984 = vmatprep.subr.mxu0 0.0
        %985 = vmatpush1.msra.mxu0 %v711
        %986 = vmatprep.subr.mxu0 0.0
        %987 = vmatpush1.msra.mxu0 %v712
        %988 = vmatprep.subr.mxu0 0.0
        %989 = vmatpush1.msra.mxu0 %v713
        %990 = vmatprep.subr.mxu0 0.0
        %991 = vmatpush1.msra.mxu0 %v714
        %992 = vmatprep.subr.mxu0 0.0
        %993 = vmatpush1.msra.mxu0 %v715
        %994 = vmatprep.subr.mxu0 0.0
        %995 = vmatpush1.msra.mxu0 %v716
        %996 = vmatprep.subr.mxu0 0.0
        %997 = vmatpush1.msra.mxu0 %v717
        %998 = vmatprep.subr.mxu0 0.0
        %999 = vmatpush1.msra.mxu0 %v718
        %1000 = vmatprep.subr.mxu0 0.0
        %1001 = vmatpush1.msra.mxu0 %v719
        %1002 = vmatprep.subr.mxu0 0.0
        %1003 = vmatpush1.msra.mxu0 %v720
        %1004 = vmatprep.subr.mxu0 0.0
        %1005 = vmatpush1.msra.mxu0 %v721
        %1006 = vmatprep.subr.mxu0 0.0
        %1007 = vmatpush1.msra.mxu0 %v722
        %1008 = vmatprep.subr.mxu0 0.0
        %1009 = vmatpush1.msra.mxu0 %v723
        %1010 = vmatprep.subr.mxu0 0.0
        %1011 = vmatpush1.msra.mxu0 %v724
        %1012 = vmatprep.subr.mxu0 0.0
        %1013 = vmatpush1.msra.mxu0 %v725
        %1014 = vmatprep.subr.mxu0 0.0
        %1015 = vmatpush1.msra.mxu0 %v726
        %1016 = vmatprep.subr.mxu0 0.0
        %1017 = vmatpush1.msra.mxu0 %v727
        %1018 = vmatprep.subr.mxu0 0.0
        %1019 = vmatpush1.msra.mxu0 %v728
        %1020 = vmatprep.subr.mxu0 0.0
        %1021 = vmatpush1.msra.mxu0 %v729
        %1022 = vmatprep.subr.mxu0 0.0
        %1023 = vmatpush1.msra.mxu0 %v730
        %1024 = vmatprep.subr.mxu0 0.0
        %1025 = vmatpush1.msra.mxu0 %v731
        %1026 = vmatprep.subr.mxu0 0.0
        %1027 = vmatpush1.msra.mxu0 %v732
        %1028 = vmatprep.subr.mxu0 0.0
        %1029 = vmatpush1.msra.mxu0 %v733
        %1030 = vmatprep.subr.mxu0 0.0
        %1031 = vmatpush1.msra.mxu0 %v734
        %1032 = vmatprep.mubr.f32.mxu0 %v605
        %1033 = vmatmul.mubr.f32.gmra.mrb[0].mxu0 %v604
        %v1034 = vpop.f32.mrb[0].mxu0
        %v1035 = vadd.f32 %v965, %v1034
        %v1036 = vpop.f32.mrb[0].mxu0
        %1037 = vdwg.mxu0
        %1038 = vmatprep.subr.mxu0 0.0
        %1039 = vmatpush1.msra.mxu0 %v735
        %1040 = vmatprep.subr.mxu0 0.0
        %1041 = vmatpush1.msra.mxu0 %v736
        %1042 = vmatprep.subr.mxu0 0.0
        %1043 = vmatpush1.msra.mxu0 %v737
        %1044 = vmatprep.subr.mxu0 0.0
        %1045 = vmatpush1.msra.mxu0 %v738
        %1046 = vmatprep.subr.mxu0 0.0
        %1047 = vmatpush1.msra.mxu0 %v739
        %1048 = vmatprep.subr.mxu0 0.0
        %1049 = vmatpush1.msra.mxu0 %v740
        %1050 = vmatprep.subr.mxu0 0.0
        %1051 = vmatpush1.msra.mxu0 %v741
        %1052 = vmatprep.subr.mxu0 0.0
        %1053 = vmatpush1.msra.mxu0 %v742
        %1054 = vmatprep.subr.mxu0 0.0
        %1055 = vmatpush1.msra.mxu0 %v743
        %1056 = vmatprep.subr.mxu0 0.0
        %1057 = vmatpush1.msra.mxu0 %v744
        %1058 = vmatprep.subr.mxu0 0.0
        %1059 = vmatpush1.msra.mxu0 %v745
        %1060 = vmatprep.subr.mxu0 0.0
        %1061 = vmatpush1.msra.mxu0 %v746
        %1062 = vmatprep.subr.mxu0 0.0
        %1063 = vmatpush1.msra.mxu0 %v747
        %1064 = vmatprep.subr.mxu0 0.0
        %1065 = vmatpush1.msra.mxu0 %v748
        %1066 = vmatprep.subr.mxu0 0.0
        %1067 = vmatpush1.msra.mxu0 %v749
        %1068 = vmatprep.subr.mxu0 0.0
        %1069 = vmatpush1.msra.mxu0 %v750
        %1070 = vmatprep.subr.mxu0 0.0
        %1071 = vmatpush1.msra.mxu0 0.0
        %1072 = vmatprep.subr.mxu0 0.0
        %1073 = vmatpush1.msra.mxu0 0.0
        %1074 = vmatprep.subr.mxu0 0.0
        %1075 = vmatpush1.msra.mxu0 0.0
        %1076 = vmatprep.subr.mxu0 0.0
        %1077 = vmatpush1.msra.mxu0 0.0
        %1078 = vmatprep.subr.mxu0 0.0
        %1079 = vmatpush1.msra.mxu0 0.0
        %1080 = vmatprep.subr.mxu0 0.0
        %1081 = vmatpush1.msra.mxu0 0.0
        %1082 = vmatprep.subr.mxu0 0.0
        %1083 = vmatpush1.msra.mxu0 0.0
        %1084 = vmatprep.subr.mxu0 0.0
        %1085 = vmatpush1.msra.mxu0 0.0
        %1086 = vmatprep.subr.mxu0 0.0
        %1087 = vmatpush1.msra.mxu0 0.0
        %1088 = vmatprep.subr.mxu0 0.0
        %1089 = vmatpush1.msra.mxu0 0.0
        %1090 = vmatprep.subr.mxu0 0.0
        %1091 = vmatpush1.msra.mxu0 0.0
        %1092 = vmatprep.subr.mxu0 0.0
        %1093 = vmatpush1.msra.mxu0 0.0
        %1094 = vmatprep.subr.mxu0 0.0
        %1095 = vmatpush1.msra.mxu0 0.0
        %1096 = vmatprep.subr.mxu0 0.0
        %1097 = vmatpush1.msra.mxu0 0.0
        %1098 = vmatprep.subr.mxu0 0.0
        %1099 = vmatpush1.msra.mxu0 0.0
        %1100 = vmatprep.subr.mxu0 0.0
        %1101 = vmatpush1.msra.mxu0 0.0
        %1102 = vmatprep.mubr.f32.mxu0 0.0
        %1103 = vmatmul.mubr.f32.gmra.mrb[0].mxu0 %v606
        %v1104 = vpop.f32.mrb[0].mxu0
        %v1105 = vadd.f32 %v1035, %v1104
        %v1106 = vpop.f32.mrb[0].mxu0
        %1107 = vdwg.mxu0
        %v1108 = vmax.f32 %v1105, 0.0
        %v1109 = vld [vmem:[%s487] sm:$0xff]
        %v1110 = vld [vmem:[%s487 + $0x8] sm:$0xff]
        %v1111 = vld [vmem:[%s487 + $0x10] sm:$0xff]
        %v1112 = vld [vmem:[%s487 + $0x18] sm:$0xff]
        %v1113 = vld [vmem:[%s487 + $0x20] sm:$0xff]
        %v1114 = vld [vmem:[%s487 + $0x28] sm:$0xff]
        %v1115 = vld [vmem:[%s487 + $0x30] sm:$0xff]
        %v1116 = vld [vmem:[%s487 + $0x38] sm:$0xff]
        %v1117 = vld [vmem:[%s487 + $0x40] sm:$0xff]
        %v1118 = vld [vmem:[%s487 + $0x48] sm:$0xff]
        %v1119 = vld [vmem:[%s487 + $0x50] sm:$0xff]
        %v1120 = vld [vmem:[%s487 + $0x58] sm:$0xff]
        %v1121 = vld [vmem:[%s487 + $0x60] sm:$0xff]
        %v1122 = vld [vmem:[%s487 + $0x68] sm:$0xff]
        %v1123 = vld [vmem:[%s487 + $0x70] sm:$0xff]
        %v1124 = vld [vmem:[%s487 + $0x78] sm:$0xff]
        %v1125 = vld [vmem:[%s495] sm:$0x1]
        %v1127 = vlaneseq
        %v1128 = vshrl.u32 %v1127, 7
        %v1129 = vsub.s32 0, %v1128
        %v1130 = vrot.slane %v1125, %v1129
        %1132 = vmatprep.subr.mxu0 0.0
        %1133 = vmatpush1.msra.mxu0 %v1109
        %1134 = vmatprep.subr.mxu0 0.0
        %1135 = vmatpush1.msra.mxu0 %v1110
        %1136 = vmatprep.subr.mxu0 0.0
        %1137 = vmatpush1.msra.mxu0 %v1111
        %1138 = vmatprep.subr.mxu0 0.0
        %1139 = vmatpush1.msra.mxu0 %v1112
        %1140 = vmatprep.subr.mxu0 0.0
        %1141 = vmatpush1.msra.mxu0 %v1113
        %1142 = vmatprep.subr.mxu0 0.0
        %1143 = vmatpush1.msra.mxu0 %v1114
        %1144 = vmatprep.subr.mxu0 0.0
        %1145 = vmatpush1.msra.mxu0 %v1115
        %1146 = vmatprep.subr.mxu0 0.0
        %1147 = vmatpush1.msra.mxu0 %v1116
        %1148 = vmatprep.subr.mxu0 0.0
        %1149 = vmatpush1.msra.mxu0 %v1117
        %1150 = vmatprep.subr.mxu0 0.0
        %1151 = vmatpush1.msra.mxu0 %v1118
        %1152 = vmatprep.subr.mxu0 0.0
        %1153 = vmatpush1.msra.mxu0 %v1119
        %1154 = vmatprep.subr.mxu0 0.0
        %1155 = vmatpush1.msra.mxu0 %v1120
        %1156 = vmatprep.subr.mxu0 0.0
        %1157 = vmatpush1.msra.mxu0 %v1121
        %1158 = vmatprep.subr.mxu0 0.0
        %1159 = vmatpush1.msra.mxu0 %v1122
        %1160 = vmatprep.subr.mxu0 0.0
        %1161 = vmatpush1.msra.mxu0 %v1123
        %1162 = vmatprep.subr.mxu0 0.0
        %1163 = vmatpush1.msra.mxu0 %v1124
        %1164 = vmatprep.subr.mxu0 0.0
        %1165 = vmatpush1.msra.mxu0 0.0
        %1166 = vmatprep.subr.mxu0 0.0
        %1167 = vmatpush1.msra.mxu0 0.0
        %1168 = vmatprep.subr.mxu0 0.0
        %1169 = vmatpush1.msra.mxu0 0.0
        %1170 = vmatprep.subr.mxu0 0.0
        %1171 = vmatpush1.msra.mxu0 0.0
        %1172 = vmatprep.subr.mxu0 0.0
        %1173 = vmatpush1.msra.mxu0 0.0
        %1174 = vmatprep.subr.mxu0 0.0
        %1175 = vmatpush1.msra.mxu0 0.0
        %1176 = vmatprep.subr.mxu0 0.0
        %1177 = vmatpush1.msra.mxu0 0.0
        %1178 = vmatprep.subr.mxu0 0.0
        %1179 = vmatpush1.msra.mxu0 0.0
        %1180 = vmatprep.subr.mxu0 0.0
        %1181 = vmatpush1.msra.mxu0 0.0
        %1182 = vmatprep.subr.mxu0 0.0
        %1183 = vmatpush1.msra.mxu0 0.0
        %1184 = vmatprep.subr.mxu0 0.0
        %1185 = vmatpush1.msra.mxu0 0.0
        %1186 = vmatprep.subr.mxu0 0.0
        %1187 = vmatpush1.msra.mxu0 0.0
        %1188 = vmatprep.subr.mxu0 0.0
        %1189 = vmatpush1.msra.mxu0 0.0
        %1190 = vmatprep.subr.mxu0 0.0
        %1191 = vmatpush1.msra.mxu0 0.0
        %1192 = vmatprep.subr.mxu0 0.0
        %1193 = vmatpush1.msra.mxu0 0.0
        %1194 = vmatprep.subr.mxu0 0.0
        %1195 = vmatpush1.msra.mxu0 0.0
        %1196 = vmatprep.mubr.f32.mxu0 0.0
        %1197 = vmatmul.mubr.f32.gmra.mrb[0].mxu0 %v1108
        %v1198 = vpop.f32.mrb[0].mxu0
        %v1199 = vadd.f32 %v1130, %v1198
        %v1200 = vpop.f32.mrb[0].mxu0
        %1201 = vdwg.mxu0
        %v1202 = vmax.f32 %v1199, 0.0
        %v1203 = vld [vmem:[%s504] sm:$0xff]
        %v1204 = vld [vmem:[%s504 + $0x8] sm:$0xff]
        %v1205 = vld [vmem:[%s504 + $0x10] sm:$0xff]
        %v1206 = vld [vmem:[%s504 + $0x18] sm:$0xff]
        %v1207 = vld [vmem:[%s504 + $0x20] sm:$0xff]
        %v1208 = vld [vmem:[%s504 + $0x28] sm:$0xff]
        %v1209 = vld [vmem:[%s504 + $0x30] sm:$0xff]
        %v1210 = vld [vmem:[%s504 + $0x38] sm:$0xff]
        %v1211 = vld [vmem:[%s504 + $0x40] sm:$0xff]
        %v1212 = vld [vmem:[%s504 + $0x48] sm:$0xff]
        %v1213 = vld [vmem:[%s504 + $0x50] sm:$0xff]
        %v1214 = vld [vmem:[%s504 + $0x58] sm:$0xff]
        %v1215 = vld [vmem:[%s504 + $0x60] sm:$0xff]
        %v1216 = vld [vmem:[%s504 + $0x68] sm:$0xff]
        %v1217 = vld [vmem:[%s504 + $0x70] sm:$0xff]
        %v1218 = vld [vmem:[%s504 + $0x78] sm:$0xff]
        %v1219 = vld [vmem:[%s512] sm:$0x1]
        %v1221 = vlaneseq
        %v1222 = vshrl.u32 %v1221, 7
        %v1223 = vsub.s32 0, %v1222
        %v1224 = vrot.slane %v1219, %v1223
        %1226 = vmatprep.subr.mxu0 0.0
        %1227 = vmatpush1.msra.mxu0 %v1203
        %1228 = vmatprep.subr.mxu0 0.0
        %1229 = vmatpush1.msra.mxu0 %v1204
        %1230 = vmatprep.subr.mxu0 0.0
        %1231 = vmatpush1.msra.mxu0 %v1205
        %1232 = vmatprep.subr.mxu0 0.0
        %1233 = vmatpush1.msra.mxu0 %v1206
        %1234 = vmatprep.subr.mxu0 0.0
        %1235 = vmatpush1.msra.mxu0 %v1207
        %1236 = vmatprep.subr.mxu0 0.0
        %1237 = vmatpush1.msra.mxu0 %v1208
        %1238 = vmatprep.subr.mxu0 0.0
        %1239 = vmatpush1.msra.mxu0 %v1209
        %1240 = vmatprep.subr.mxu0 0.0
        %1241 = vmatpush1.msra.mxu0 %v1210
        %1242 = vmatprep.subr.mxu0 0.0
        %1243 = vmatpush1.msra.mxu0 %v1211
        %1244 = vmatprep.subr.mxu0 0.0
        %1245 = vmatpush1.msra.mxu0 %v1212
        %1246 = vmatprep.subr.mxu0 0.0
        %1247 = vmatpush1.msra.mxu0 %v1213
        %1248 = vmatprep.subr.mxu0 0.0
        %1249 = vmatpush1.msra.mxu0 %v1214
        %1250 = vmatprep.subr.mxu0 0.0
        %1251 = vmatpush1.msra.mxu0 %v1215
        %1252 = vmatprep.subr.mxu0 0.0
        %1253 = vmatpush1.msra.mxu0 %v1216
        %1254 = vmatprep.subr.mxu0 0.0
        %1255 = vmatpush1.msra.mxu0 %v1217
        %1256 = vmatprep.subr.mxu0 0.0
        %1257 = vmatpush1.msra.mxu0 %v1218
        %1258 = vmatprep.subr.mxu0 0.0
        %1259 = vmatpush1.msra.mxu0 0.0
        %1260 = vmatprep.subr.mxu0 0.0
        %1261 = vmatpush1.msra.mxu0 0.0
        %1262 = vmatprep.subr.mxu0 0.0
        %1263 = vmatpush1.msra.mxu0 0.0
        %1264 = vmatprep.subr.mxu0 0.0
        %1265 = vmatpush1.msra.mxu0 0.0
        %1266 = vmatprep.subr.mxu0 0.0
        %1267 = vmatpush1.msra.mxu0 0.0
        %1268 = vmatprep.subr.mxu0 0.0
        %1269 = vmatpush1.msra.mxu0 0.0
        %1270 = vmatprep.subr.mxu0 0.0
        %1271 = vmatpush1.msra.mxu0 0.0
        %1272 = vmatprep.subr.mxu0 0.0
        %1273 = vmatpush1.msra.mxu0 0.0
        %1274 = vmatprep.subr.mxu0 0.0
        %1275 = vmatpush1.msra.mxu0 0.0
        %1276 = vmatprep.subr.mxu0 0.0
        %1277 = vmatpush1.msra.mxu0 0.0
        %1278 = vmatprep.subr.mxu0 0.0
        %1279 = vmatpush1.msra.mxu0 0.0
        %1280 = vmatprep.subr.mxu0 0.0
        %1281 = vmatpush1.msra.mxu0 0.0
        %1282 = vmatprep.subr.mxu0 0.0
        %1283 = vmatpush1.msra.mxu0 0.0
        %1284 = vmatprep.subr.mxu0 0.0
        %1285 = vmatpush1.msra.mxu0 0.0
        %1286 = vmatprep.subr.mxu0 0.0
        %1287 = vmatpush1.msra.mxu0 0.0
        %1288 = vmatprep.subr.mxu0 0.0
        %1289 = vmatpush1.msra.mxu0 0.0
        %1290 = vmatprep.mubr.f32.mxu0 0.0
        %1291 = vmatmul.mubr.f32.gmra.mrb[0].mxu0 %v1202
        %v1292 = vpop.f32.mrb[0].mxu0
        %v1293 = vadd.f32 %v1224, %v1292
        %v1294 = vpop.f32.mrb[0].mxu0
        %1295 = vdwg.mxu0
        %v1296 = vmax.f32 %v1293, 0.0
        %v1297 = vld [vmem:[%s521] sm:$0xff]
        %v1298 = vld [vmem:[%s521 + $0x8] sm:$0xff]
        %v1299 = vld [vmem:[%s521 + $0x10] sm:$0xff]
        %v1300 = vld [vmem:[%s521 + $0x18] sm:$0xff]
        %v1301 = vld [vmem:[%s521 + $0x20] sm:$0xff]
        %v1302 = vld [vmem:[%s521 + $0x28] sm:$0xff]
        %v1303 = vld [vmem:[%s521 + $0x30] sm:$0xff]
        %v1304 = vld [vmem:[%s521 + $0x38] sm:$0xff]
        %v1305 = vld [vmem:[%s521 + $0x40] sm:$0xff]
        %v1306 = vld [vmem:[%s521 + $0x48] sm:$0xff]
        %v1307 = vld [vmem:[%s521 + $0x50] sm:$0xff]
        %v1308 = vld [vmem:[%s521 + $0x58] sm:$0xff]
        %v1309 = vld [vmem:[%s521 + $0x60] sm:$0xff]
        %v1310 = vld [vmem:[%s521 + $0x68] sm:$0xff]
        %v1311 = vld [vmem:[%s521 + $0x70] sm:$0xff]
        %v1312 = vld [vmem:[%s521 + $0x78] sm:$0xff]
        %v1313 = vld [vmem:[%s529] sm:$0x1]
        %v1315 = vlaneseq
        %v1316 = vshrl.u32 %v1315, 7
        %v1317 = vsub.s32 0, %v1316
        %v1318 = vrot.slane %v1313, %v1317
        %1320 = vmatprep.subr.mxu0 0.0
        %1321 = vmatpush1.msra.mxu0 %v1297
        %1322 = vmatprep.subr.mxu0 0.0
        %1323 = vmatpush1.msra.mxu0 %v1298
        %1324 = vmatprep.subr.mxu0 0.0
        %1325 = vmatpush1.msra.mxu0 %v1299
        %1326 = vmatprep.subr.mxu0 0.0
        %1327 = vmatpush1.msra.mxu0 %v1300
        %1328 = vmatprep.subr.mxu0 0.0
        %1329 = vmatpush1.msra.mxu0 %v1301
        %1330 = vmatprep.subr.mxu0 0.0
        %1331 = vmatpush1.msra.mxu0 %v1302
        %1332 = vmatprep.subr.mxu0 0.0
        %1333 = vmatpush1.msra.mxu0 %v1303
        %1334 = vmatprep.subr.mxu0 0.0
        %1335 = vmatpush1.msra.mxu0 %v1304
        %1336 = vmatprep.subr.mxu0 0.0
        %1337 = vmatpush1.msra.mxu0 %v1305
        %1338 = vmatprep.subr.mxu0 0.0
        %1339 = vmatpush1.msra.mxu0 %v1306
        %1340 = vmatprep.subr.mxu0 0.0
        %1341 = vmatpush1.msra.mxu0 %v1307
        %1342 = vmatprep.subr.mxu0 0.0
        %1343 = vmatpush1.msra.mxu0 %v1308
        %1344 = vmatprep.subr.mxu0 0.0
        %1345 = vmatpush1.msra.mxu0 %v1309
        %1346 = vmatprep.subr.mxu0 0.0
        %1347 = vmatpush1.msra.mxu0 %v1310
        %1348 = vmatprep.subr.mxu0 0.0
        %1349 = vmatpush1.msra.mxu0 %v1311
        %1350 = vmatprep.subr.mxu0 0.0
        %1351 = vmatpush1.msra.mxu0 %v1312
        %1352 = vmatprep.subr.mxu0 0.0
        %1353 = vmatpush1.msra.mxu0 0.0
        %1354 = vmatprep.subr.mxu0 0.0
        %1355 = vmatpush1.msra.mxu0 0.0
        %1356 = vmatprep.subr.mxu0 0.0
        %1357 = vmatpush1.msra.mxu0 0.0
        %1358 = vmatprep.subr.mxu0 0.0
        %1359 = vmatpush1.msra.mxu0 0.0
        %1360 = vmatprep.subr.mxu0 0.0
        %1361 = vmatpush1.msra.mxu0 0.0
        %1362 = vmatprep.subr.mxu0 0.0
        %1363 = vmatpush1.msra.mxu0 0.0
        %1364 = vmatprep.subr.mxu0 0.0
        %1365 = vmatpush1.msra.mxu0 0.0
        %1366 = vmatprep.subr.mxu0 0.0
        %1367 = vmatpush1.msra.mxu0 0.0
        %1368 = vmatprep.subr.mxu0 0.0
        %1369 = vmatpush1.msra.mxu0 0.0
        %1370 = vmatprep.subr.mxu0 0.0
        %1371 = vmatpush1.msra.mxu0 0.0
        %1372 = vmatprep.subr.mxu0 0.0
        %1373 = vmatpush1.msra.mxu0 0.0
        %1374 = vmatprep.subr.mxu0 0.0
        %1375 = vmatpush1.msra.mxu0 0.0
        %1376 = vmatprep.subr.mxu0 0.0
        %1377 = vmatpush1.msra.mxu0 0.0
        %1378 = vmatprep.subr.mxu0 0.0
        %1379 = vmatpush1.msra.mxu0 0.0
        %1380 = vmatprep.subr.mxu0 0.0
        %1381 = vmatpush1.msra.mxu0 0.0
        %1382 = vmatprep.subr.mxu0 0.0
        %1383 = vmatpush1.msra.mxu0 0.0
        %1384 = vmatprep.mubr.f32.mxu0 0.0
        %1385 = vmatmul.mubr.f32.gmra.mrb[0].mxu0 %v1296
        %v1386 = vpop.f32.mrb[0].mxu0
        %v1387 = vadd.f32 %v1318, %v1386
        %v1388 = vpop.f32.mrb[0].mxu0
        %1389 = vdwg.mxu0
        %1390 = vst [vmem:[%s597] sm:$0xff] %v1387
        %p1391 = scmp.lt.s32.totalorder %s35, 1
        %s1392 = scalar_select %p1391, %s35, 1
        %s1393 = smul.addr %s1392, 8
        %s1394 = scalar_lea.vmem %s9, %s1393
        // Predicated region
        $region89: #{_forward_impl.1} parent=55 // pred_check
          %p1395 = pneg %p282
        $region90: #{_forward_impl.1} parent=55 // pred_check_branch
          %1397 = sbr.rel (%p1395) target = $region92
        $region91: #{_forward_impl.1} parent=55 // pred_region
          _
        $region92: #{_forward_impl.1} parent=55 // pred_fallthru
          _
      $region56: #{_forward_impl.1} parent=5 // pred_fallthru
        _
      %p1398 = scmp.le.s32.totalorder 2, %s30
      // Predicated region
      $region93: #{_forward_impl.1} parent=5 // pred_check
        %p1399 = pneg %p1398
      $region94: #{_forward_impl.1} parent=5 // pred_check_branch
        %1401 = sbr.rel (%p1399) target = $region96
      $region95: #{_forward_impl.1} parent=5 // pred_region
        %s1402 = ssub.s32 %s30, 2
        // Predicated region
        $region97: #{_forward_impl.1} parent=95 // pred_check
          %p1403 = pneg %p288
        $region98: #{_forward_impl.1} parent=95 // pred_check_branch
          %1405 = sbr.rel (%p1403) target = $region100
        $region99: #{_forward_impl.1} parent=95 // pred_region
          %p1406 = scmp.lt.s32.totalorder %s36, 1
          %s1407 = scalar_select %p1406, %s36, 1
          %s1408 = smul.addr %s1407, 8
          %s1409 = scalar_lea.vmem %s9, %s1408
        $region100: #{_forward_impl.1} parent=95 // pred_fallthru
          _
      $region96: #{_forward_impl.1} parent=5 // pred_fallthru
        _
    $region6: #{_forward_impl.1} parent=1 // loop_footer
      %s34 = sadd.s32 1, %s30
    $region7: #{_forward_impl.1} parent=1 // loop_footer_branch
      %29 = sbr.rel target = $region3
    $region8: #{_forward_impl.1} parent=1 // loop_exit
      _
    %1410 = vsyncpa [#allocation3], 1
    %s1411 = scalar_lea.sflag [#allocation3], 1
    %1412 = vsyncpa %s1411, 1
    %1413 = vsyncpa [#allocation5], 1
    %s1414 = scalar_lea.sflag [#allocation5], 1
    %1415 = vsyncpa %s1414, 1
    %1416 = vsyncpa [#allocation8], 1
    %s1417 = scalar_lea.sflag [#allocation8], 1
    %1418 = vsyncpa %s1417, 1
    %1419 = vsyncpa [#allocation11], 1
    %s1420 = scalar_lea.sflag [#allocation11], 1
    %1421 = vsyncpa %s1420, 1
    %1422 = vsyncpa [#allocation14], 1
    %s1423 = scalar_lea.sflag [#allocation14], 1
    %1424 = vsyncpa %s1423, 1

</llo_original>
